<compile_context>
chip_gen: v7x
topology: tpu7x:2x2x1
jax: 0.10.0
libtpu: 0.0.40
codegen_flags: <defaults>
</compile_context>

<pallas_src>
import jax
import jax.numpy as jnp
from jax import lax
from jax.experimental import pallas as pl
from jax.experimental.pallas import tpu as pltpu


def _traj_kernel(x_ref, wih_ref, whh_ref, b_ref, wfc_ref, bfc_ref, out_ref):
    """Single-invocation kernel: unrolled LSTM + masked dot-attention + split FC + log_softmax.

    x_ref   : [T, D_in]    input features (loc_emb || tim_emb)
    wih_ref : [D_in, 4H]   LSTM weight_ih (transposed, gate order i,f,g,o)
    whh_ref : [H, 4H]      LSTM weight_hh (transposed)
    b_ref   : [1, 4H]      bias_ih + bias_hh
    wfc_ref : [2H, Vp]     fc_final weight (transposed, zero-padded to lane-dense Vp)
    bfc_ref : [1, Vp]      fc_final bias (-1e30 in padded columns)
    out_ref : [T, Vp]      log-softmax scores (padded columns garbage, sliced off outside)
    """
    T = x_ref.shape[0]
    H = whh_ref.shape[0]

    # bf16 MXU operands (weights cast once), f32 accumulation and f32 elementwise math.
    x_bf = x_ref[...].astype(jnp.bfloat16)
    wih_bf = wih_ref[...].astype(jnp.bfloat16)
    whh_bf = whh_ref[...].astype(jnp.bfloat16)
    b = b_ref[...]

    # Input contribution to all gates for every timestep at once: [T, 4H] (f32 accumulate).
    xg = jnp.dot(x_bf, wih_bf, preferred_element_type=jnp.float32) + b

    # Fully-unrolled LSTM recurrence; h/c stay in vregs, hh built by masked row insert.
    h = jnp.zeros((1, H), jnp.float32)
    c = jnp.zeros((1, H), jnp.float32)
    hh = jnp.zeros((T, H), jnp.float32)
    row_ids = lax.broadcasted_iota(jnp.int32, (T, H), 0)

    for t in range(T):  # T static -> static slices, full LLO visibility
        g = xg[t:t + 1, :] + jnp.dot(h.astype(jnp.bfloat16), whh_bf,
                                     preferred_element_type=jnp.float32)      # [1, 4H]
        # Two full-vreg EUP pushes per step: sigmoid via tanh identity + tanh, then lane slices.
        sig_all = 0.5 * jnp.tanh(0.5 * g) + 0.5
        tanh_all = jnp.tanh(g)
        i_g = sig_all[:, 0 * H:1 * H]
        f_g = sig_all[:, 1 * H:2 * H]
        o_g = sig_all[:, 3 * H:4 * H]
        g_g = tanh_all[:, 2 * H:3 * H]
        c = f_g * c + i_g * g_g
        h = o_g * jnp.tanh(c)
        hh = jnp.where(row_ids == t, h, hh)       # VPU masked insert (no sublane concat)

    hh_bf = hh.astype(jnp.bfloat16)

    # Attention energies: energies[i, j] = hidden[i] . hidden[j]  (contract last dims, no .T).
    energies = lax.dot_general(hh_bf, hh_bf, (((1,), (1,)), ((), ())),
                               preferred_element_type=jnp.float32)            # [T, T]

    # Causal mask exactly as in the torch module: tril kept, strict upper -> -1e11.
    row = lax.broadcasted_iota(jnp.int32, (T, T), 0)
    col = lax.broadcasted_iota(jnp.int32, (T, T), 1)
    energies = jnp.where(col <= row, energies, jnp.float32(-100000000000.0))

    # softmax over last dim in f32 (EUP reciprocal — essentially free).
    e_max = jnp.max(energies, axis=-1, keepdims=True)
    e_exp = jnp.exp(energies - e_max)
    attn = e_exp * pl.reciprocal(jnp.sum(e_exp, axis=-1, keepdims=True), approx=True)

    context = jnp.dot(attn.astype(jnp.bfloat16), hh_bf,
                      preferred_element_type=jnp.float32)                     # [T, H]

    # Split final FC: y = hh @ Wfc[:H] + context @ Wfc[H:] + b  (no lane-axis concat).
    wfc_h = wfc_ref[0:H, :].astype(jnp.bfloat16)
    wfc_c = wfc_ref[H:2 * H, :].astype(jnp.bfloat16)
    y = (jnp.dot(hh_bf, wfc_h, preferred_element_type=jnp.float32)
         + jnp.dot(context.astype(jnp.bfloat16), wfc_c, preferred_element_type=jnp.float32)
         + bfc_ref[...])

    # log_softmax over last dim in f32 (padded logits are -1e30 -> exp underflows to 0).
    y_max = jnp.max(y, axis=-1, keepdims=True)
    y_shift = y - y_max
    lse = jnp.log(jnp.sum(jnp.exp(y_shift), axis=-1, keepdims=True))
    out_ref[...] = y_shift - lse


def traj_pre_local_attn_long(x, w_ih_t, w_hh_t, b_lstm, w_fc_t, b_fc):
    """Pallas wrapper. x: [T, D_in] float32. Returns [T, V] log-softmax scores."""
    T, D_in = x.shape
    H = w_hh_t.shape[0]
    V = w_fc_t.shape[1]
    Vp = ((V + 127) // 128) * 128                       # lane-dense output width

    # Zero-pad fc weight columns; pad bias with a very negative value so the padded
    # logits contribute exp(.) == 0 to the log_softmax denominator.
    w_fc_p = jnp.zeros((2 * H, Vp), jnp.float32).at[:, :V].set(w_fc_t)
    b_fc_p = jnp.full((1, Vp), -1e30, jnp.float32).at[:, :V].set(b_fc)

    vmem_spec = pl.BlockSpec(memory_space=pltpu.MemorySpace.VMEM)
    out = pl.pallas_call(
        _traj_kernel,
        out_shape=jax.ShapeDtypeStruct((T, Vp), jnp.float32),
        in_specs=[vmem_spec] * 6,     # whole arrays resident in VMEM, no grid / no pipelining
        out_specs=vmem_spec,
    )(x, w_ih_t, w_hh_t, b_lstm, w_fc_p, b_fc_p)
    return out[:, :V]


def _reference(x, w_ih_t, w_hh_t, b_lstm, w_fc_t, b_fc):
    """Pure-JAX f32 reference mirroring the PyTorch forward."""
    T = x.shape[0]
    H = w_hh_t.shape[0]
    h = jnp.zeros((1, H), jnp.float32)
    c = jnp.zeros((1, H), jnp.float32)
    hs = []
    for t in range(T):
        g = x[t:t + 1] @ w_ih_t + h @ w_hh_t + b_lstm
        i_g = jax.nn.sigmoid(g[:, 0 * H:1 * H])
        f_g = jax.nn.sigmoid(g[:, 1 * H:2 * H])
        g_g = jnp.tanh(g[:, 2 * H:3 * H])
        o_g = jax.nn.sigmoid(g[:, 3 * H:4 * H])
        c = f_g * c + i_g * g_g
        h = o_g * jnp.tanh(c)
        hs.append(h)
    hh = jnp.concatenate(hs, axis=0)
    e = hh @ hh.T
    row = lax.broadcasted_iota(jnp.int32, (T, T), 0)
    col = lax.broadcasted_iota(jnp.int32, (T, T), 1)
    e = jnp.where(col <= row, e, -100000000000.0)
    a = jax.nn.softmax(e, axis=-1)
    ctx = a @ hh
    out = jnp.concatenate([hh, ctx], axis=1)
    y = out @ w_fc_t + b_fc
    return jax.nn.log_softmax(y, axis=-1)


if __name__ == "__main__":
    # Small, module-consistent shapes.
    num_locs = 50          # vocab -> fc_final output = num_locs + 1
    loc_emb_size = 24
    tim_emb_size = 8
    hidden_size = 32
    seq_len = 12
    target_len = 8         # static slice x[:target_len]

    D_in = loc_emb_size + tim_emb_size
    H = hidden_size
    V = num_locs + 1

    key = jax.random.PRNGKey(0)
    keys = jax.random.split(key, 8)

    # Deterministic synthetic parameters (shapes from __init__).
    emb_loc = jax.random.normal(keys[0], (num_locs + 1, loc_emb_size), jnp.float32) * 0.1
    emb_tim = jax.random.normal(keys[1], (24, tim_emb_size), jnp.float32) * 0.1
    # nn.LSTM(input_size, hidden_size): weight_ih [4H, D_in], weight_hh [4H, H], biases zero
    w_ih = jax.random.normal(keys[2], (4 * H, D_in), jnp.float32) * (1.0 / jnp.sqrt(D_in))
    w_hh = jax.random.normal(keys[3], (4 * H, H), jnp.float32) * (1.0 / jnp.sqrt(H))
    b_lstm = jnp.zeros((1, 4 * H), jnp.float32)      # bias_ih + bias_hh (init to 0)
    # fc_final: Linear(2H -> V)
    w_fc = jax.random.normal(keys[4], (V, 2 * H), jnp.float32) * (1.0 / jnp.sqrt(2 * H))
    b_fc = jnp.zeros((1, V), jnp.float32)

    # Synthetic inputs: loc/tim index sequences of shape [seq_len, 1] (batch = 1).
    loc = jax.random.randint(keys[5], (seq_len, 1), 0, num_locs + 1, jnp.int32)
    tim = jax.random.randint(keys[6], (seq_len, 1), 0, 24, jnp.int32)

    # Glue: embedding gathers + concat + static target_len slice + squeeze(batch).
    loc_e = jnp.take(emb_loc, loc[:, 0], axis=0)                # [S, loc_emb]
    tim_e = jnp.take(emb_tim, tim[:, 0], axis=0)                # [S, tim_emb]
    x = jnp.concatenate([loc_e, tim_e], axis=1)[:target_len]    # [T, D_in]

    # Pre-transpose weights for the kernel ([in, out] layout).
    w_ih_t = w_ih.T          # [D_in, 4H]
    w_hh_t = w_hh.T          # [H, 4H]
    w_fc_t = w_fc.T          # [2H, V]

    score = traj_pre_local_attn_long(x, w_ih_t, w_hh_t, b_lstm, w_fc_t, b_fc)
    score = jax.block_until_ready(score)

    ref = _reference(x, w_ih_t, w_hh_t, b_lstm, w_fc_t, b_fc)
    assert score.shape == (target_len, V)
    # Tolerance slightly loosened vs. the pure-f32 version to cover bf16 MXU operands
    # (all accumulation, masking and softmax math remain f32).
    assert jnp.allclose(score, ref, atol=2e-3, rtol=2e-3), "mismatch vs reference"

    print("KERNEL_OK")
</pallas_src>

<mosaic_0001>
module attributes {stable_mosaic.version = 11 : i64} {
  func.func @_traj_kernel(%arg0: memref<8x32xf32, #tpu.memory_space<vmem>>, %arg1: memref<32x128xf32, #tpu.memory_space<vmem>>, %arg2: memref<32x128xf32, #tpu.memory_space<vmem>>, %arg3: memref<1x128xf32, #tpu.memory_space<vmem>>, %arg4: memref<64x128xf32, #tpu.memory_space<vmem>>, %arg5: memref<1x128xf32, #tpu.memory_space<vmem>>, %arg6: memref<8x128xf32, #tpu.memory_space<vmem>>) attributes {dimension_semantics = [], scalar_prefetch = 0 : i64, scratch_operands = 0 : i64, tpu.core_type = #tpu.core_type<tc>} {
    %c0 = arith.constant 0 : index
    %c0_0 = arith.constant 0 : index
    %0 = vector.load %arg0[%c0, %c0_0] : memref<8x32xf32, #tpu.memory_space<vmem>>, vector<8x32xf32>
    %1 = arith.truncf %0 : vector<8x32xf32> to vector<8x32xbf16>
    %c0_1 = arith.constant 0 : index
    %c0_2 = arith.constant 0 : index
    %2 = vector.load %arg1[%c0_1, %c0_2] : memref<32x128xf32, #tpu.memory_space<vmem>>, vector<32x128xf32>
    %3 = arith.truncf %2 : vector<32x128xf32> to vector<32x128xbf16>
    %c0_3 = arith.constant 0 : index
    %c0_4 = arith.constant 0 : index
    %4 = vector.load %arg2[%c0_3, %c0_4] : memref<32x128xf32, #tpu.memory_space<vmem>>, vector<32x128xf32>
    %5 = arith.truncf %4 : vector<32x128xf32> to vector<32x128xbf16>
    %c0_5 = arith.constant 0 : index
    %c0_6 = arith.constant 0 : index
    %6 = vector.load %arg3[%c0_5, %c0_6] : memref<1x128xf32, #tpu.memory_space<vmem>>, vector<1x128xf32>
    %cst = arith.constant dense<0.000000e+00> : vector<8x128xf32>
    %7 = tpu.matmul %1, %3, %cst {dimension_numbers = #tpu.dot_dimension_numbers<[1], [0], [0], [1], [0, 0, 1, 1], [], []>} : vector<8x32xbf16>, vector<32x128xbf16>, vector<8x128xf32> -> vector<8x128xf32>
    %8 = vector.broadcast %6 : vector<1x128xf32> to vector<8x128xf32>
    %9 = arith.addf %7, %8 : vector<8x128xf32>
    %cst_7 = arith.constant 0.000000e+00 : f32
    %10 = vector.broadcast %cst_7 : f32 to vector<1x32xf32>
    %cst_8 = arith.constant 0.000000e+00 : f32
    %11 = vector.broadcast %cst_8 : f32 to vector<1x32xf32>
    %cst_9 = arith.constant 0.000000e+00 : f32
    %12 = vector.broadcast %cst_9 : f32 to vector<8x32xf32>
    %13 = tpu.iota {dimensions = array<i32: 0>} : vector<8x32xi32>
    %14 = vector.extract_strided_slice %9 {offsets = [0, 0], sizes = [1, 128], strides = [1, 1]} : vector<8x128xf32> to vector<1x128xf32>
    %15 = arith.truncf %10 : vector<1x32xf32> to vector<1x32xbf16>
    %cst_10 = arith.constant dense<0.000000e+00> : vector<1x128xf32>
    %16 = tpu.matmul %15, %5, %cst_10 {dimension_numbers = #tpu.dot_dimension_numbers<[1], [0], [0], [1], [0, 0, 1, 1], [], []>} : vector<1x32xbf16>, vector<32x128xbf16>, vector<1x128xf32> -> vector<1x128xf32>
    %17 = arith.addf %14, %16 : vector<1x128xf32>
    %cst_11 = arith.constant 5.000000e-01 : f32
    %18 = vector.broadcast %cst_11 : f32 to vector<1x128xf32>
    %19 = arith.mulf %18, %17 : vector<1x128xf32>
    %20 = math.tanh %19 : vector<1x128xf32>
    %cst_12 = arith.constant 5.000000e-01 : f32
    %21 = vector.broadcast %cst_12 : f32 to vector<1x128xf32>
    %22 = arith.mulf %21, %20 : vector<1x128xf32>
    %cst_13 = arith.constant 5.000000e-01 : f32
    %23 = vector.broadcast %cst_13 : f32 to vector<1x128xf32>
    %24 = arith.addf %22, %23 : vector<1x128xf32>
    %25 = math.tanh %17 : vector<1x128xf32>
    %26 = vector.extract_strided_slice %24 {offsets = [0, 0], sizes = [1, 32], strides = [1, 1]} : vector<1x128xf32> to vector<1x32xf32>
    %27 = vector.extract_strided_slice %24 {offsets = [0, 32], sizes = [1, 32], strides = [1, 1]} : vector<1x128xf32> to vector<1x32xf32>
    %28 = vector.extract_strided_slice %24 {offsets = [0, 96], sizes = [1, 32], strides = [1, 1]} : vector<1x128xf32> to vector<1x32xf32>
    %29 = vector.extract_strided_slice %25 {offsets = [0, 64], sizes = [1, 32], strides = [1, 1]} : vector<1x128xf32> to vector<1x32xf32>
    %30 = arith.mulf %27, %11 : vector<1x32xf32>
    %31 = arith.mulf %26, %29 : vector<1x32xf32>
    %32 = arith.addf %30, %31 : vector<1x32xf32>
    %33 = math.tanh %32 : vector<1x32xf32>
    %34 = arith.mulf %28, %33 : vector<1x32xf32>
    %c0_i32 = arith.constant 0 : i32
    %35 = vector.broadcast %c0_i32 : i32 to vector<8x32xi32>
    %36 = arith.cmpi eq, %13, %35 : vector<8x32xi32>
    %37 = vector.shape_cast %34 : vector<1x32xf32> to vector<1x32xf32>
    %38 = vector.broadcast %37 : vector<1x32xf32> to vector<8x32xf32>
    %39 = arith.select %36, %38, %12 : vector<8x32xi1>, vector<8x32xf32>
    %40 = vector.extract_strided_slice %9 {offsets = [1, 0], sizes = [1, 128], strides = [1, 1]} : vector<8x128xf32> to vector<1x128xf32>
    %41 = arith.truncf %34 : vector<1x32xf32> to vector<1x32xbf16>
    %cst_14 = arith.constant dense<0.000000e+00> : vector<1x128xf32>
    %42 = tpu.matmul %41, %5, %cst_14 {dimension_numbers = #tpu.dot_dimension_numbers<[1], [0], [0], [1], [0, 0, 1, 1], [], []>} : vector<1x32xbf16>, vector<32x128xbf16>, vector<1x128xf32> -> vector<1x128xf32>
    %43 = arith.addf %40, %42 : vector<1x128xf32>
    %cst_15 = arith.constant 5.000000e-01 : f32
    %44 = vector.broadcast %cst_15 : f32 to vector<1x128xf32>
    %45 = arith.mulf %44, %43 : vector<1x128xf32>
    %46 = math.tanh %45 : vector<1x128xf32>
    %cst_16 = arith.constant 5.000000e-01 : f32
    %47 = vector.broadcast %cst_16 : f32 to vector<1x128xf32>
    %48 = arith.mulf %47, %46 : vector<1x128xf32>
    %cst_17 = arith.constant 5.000000e-01 : f32
    %49 = vector.broadcast %cst_17 : f32 to vector<1x128xf32>
    %50 = arith.addf %48, %49 : vector<1x128xf32>
    %51 = math.tanh %43 : vector<1x128xf32>
    %52 = vector.extract_strided_slice %50 {offsets = [0, 0], sizes = [1, 32], strides = [1, 1]} : vector<1x128xf32> to vector<1x32xf32>
    %53 = vector.extract_strided_slice %50 {offsets = [0, 32], sizes = [1, 32], strides = [1, 1]} : vector<1x128xf32> to vector<1x32xf32>
    %54 = vector.extract_strided_slice %50 {offsets = [0, 96], sizes = [1, 32], strides = [1, 1]} : vector<1x128xf32> to vector<1x32xf32>
    %55 = vector.extract_strided_slice %51 {offsets = [0, 64], sizes = [1, 32], strides = [1, 1]} : vector<1x128xf32> to vector<1x32xf32>
    %56 = arith.mulf %53, %32 : vector<1x32xf32>
    %57 = arith.mulf %52, %55 : vector<1x32xf32>
    %58 = arith.addf %56, %57 : vector<1x32xf32>
    %59 = math.tanh %58 : vector<1x32xf32>
    %60 = arith.mulf %54, %59 : vector<1x32xf32>
    %c1_i32 = arith.constant 1 : i32
    %61 = vector.broadcast %c1_i32 : i32 to vector<8x32xi32>
    %62 = arith.cmpi eq, %13, %61 : vector<8x32xi32>
    %63 = vector.shape_cast %60 : vector<1x32xf32> to vector<1x32xf32>
    %64 = vector.broadcast %63 : vector<1x32xf32> to vector<8x32xf32>
    %65 = arith.select %62, %64, %39 : vector<8x32xi1>, vector<8x32xf32>
    %66 = vector.extract_strided_slice %9 {offsets = [2, 0], sizes = [1, 128], strides = [1, 1]} : vector<8x128xf32> to vector<1x128xf32>
    %67 = arith.truncf %60 : vector<1x32xf32> to vector<1x32xbf16>
    %cst_18 = arith.constant dense<0.000000e+00> : vector<1x128xf32>
    %68 = tpu.matmul %67, %5, %cst_18 {dimension_numbers = #tpu.dot_dimension_numbers<[1], [0], [0], [1], [0, 0, 1, 1], [], []>} : vector<1x32xbf16>, vector<32x128xbf16>, vector<1x128xf32> -> vector<1x128xf32>
    %69 = arith.addf %66, %68 : vector<1x128xf32>
    %cst_19 = arith.constant 5.000000e-01 : f32
    %70 = vector.broadcast %cst_19 : f32 to vector<1x128xf32>
    %71 = arith.mulf %70, %69 : vector<1x128xf32>
    %72 = math.tanh %71 : vector<1x128xf32>
    %cst_20 = arith.constant 5.000000e-01 : f32
    %73 = vector.broadcast %cst_20 : f32 to vector<1x128xf32>
    %74 = arith.mulf %73, %72 : vector<1x128xf32>
    %cst_21 = arith.constant 5.000000e-01 : f32
    %75 = vector.broadcast %cst_21 : f32 to vector<1x128xf32>
    %76 = arith.addf %74, %75 : vector<1x128xf32>
    %77 = math.tanh %69 : vector<1x128xf32>
    %78 = vector.extract_strided_slice %76 {offsets = [0, 0], sizes = [1, 32], strides = [1, 1]} : vector<1x128xf32> to vector<1x32xf32>
    %79 = vector.extract_strided_slice %76 {offsets = [0, 32], sizes = [1, 32], strides = [1, 1]} : vector<1x128xf32> to vector<1x32xf32>
    %80 = vector.extract_strided_slice %76 {offsets = [0, 96], sizes = [1, 32], strides = [1, 1]} : vector<1x128xf32> to vector<1x32xf32>
    %81 = vector.extract_strided_slice %77 {offsets = [0, 64], sizes = [1, 32], strides = [1, 1]} : vector<1x128xf32> to vector<1x32xf32>
    %82 = arith.mulf %79, %58 : vector<1x32xf32>
    %83 = arith.mulf %78, %81 : vector<1x32xf32>
    %84 = arith.addf %82, %83 : vector<1x32xf32>
    %85 = math.tanh %84 : vector<1x32xf32>
    %86 = arith.mulf %80, %85 : vector<1x32xf32>
    %c2_i32 = arith.constant 2 : i32
    %87 = vector.broadcast %c2_i32 : i32 to vector<8x32xi32>
    %88 = arith.cmpi eq, %13, %87 : vector<8x32xi32>
    %89 = vector.shape_cast %86 : vector<1x32xf32> to vector<1x32xf32>
    %90 = vector.broadcast %89 : vector<1x32xf32> to vector<8x32xf32>
    %91 = arith.select %88, %90, %65 : vector<8x32xi1>, vector<8x32xf32>
    %92 = vector.extract_strided_slice %9 {offsets = [3, 0], sizes = [1, 128], strides = [1, 1]} : vector<8x128xf32> to vector<1x128xf32>
    %93 = arith.truncf %86 : vector<1x32xf32> to vector<1x32xbf16>
    %cst_22 = arith.constant dense<0.000000e+00> : vector<1x128xf32>
    %94 = tpu.matmul %93, %5, %cst_22 {dimension_numbers = #tpu.dot_dimension_numbers<[1], [0], [0], [1], [0, 0, 1, 1], [], []>} : vector<1x32xbf16>, vector<32x128xbf16>, vector<1x128xf32> -> vector<1x128xf32>
    %95 = arith.addf %92, %94 : vector<1x128xf32>
    %cst_23 = arith.constant 5.000000e-01 : f32
    %96 = vector.broadcast %cst_23 : f32 to vector<1x128xf32>
    %97 = arith.mulf %96, %95 : vector<1x128xf32>
    %98 = math.tanh %97 : vector<1x128xf32>
    %cst_24 = arith.constant 5.000000e-01 : f32
    %99 = vector.broadcast %cst_24 : f32 to vector<1x128xf32>
    %100 = arith.mulf %99, %98 : vector<1x128xf32>
    %cst_25 = arith.constant 5.000000e-01 : f32
    %101 = vector.broadcast %cst_25 : f32 to vector<1x128xf32>
    %102 = arith.addf %100, %101 : vector<1x128xf32>
    %103 = math.tanh %95 : vector<1x128xf32>
    %104 = vector.extract_strided_slice %102 {offsets = [0, 0], sizes = [1, 32], strides = [1, 1]} : vector<1x128xf32> to vector<1x32xf32>
    %105 = vector.extract_strided_slice %102 {offsets = [0, 32], sizes = [1, 32], strides = [1, 1]} : vector<1x128xf32> to vector<1x32xf32>
    %106 = vector.extract_strided_slice %102 {offsets = [0, 96], sizes = [1, 32], strides = [1, 1]} : vector<1x128xf32> to vector<1x32xf32>
    %107 = vector.extract_strided_slice %103 {offsets = [0, 64], sizes = [1, 32], strides = [1, 1]} : vector<1x128xf32> to vector<1x32xf32>
    %108 = arith.mulf %105, %84 : vector<1x32xf32>
    %109 = arith.mulf %104, %107 : vector<1x32xf32>
    %110 = arith.addf %108, %109 : vector<1x32xf32>
    %111 = math.tanh %110 : vector<1x32xf32>
    %112 = arith.mulf %106, %111 : vector<1x32xf32>
    %c3_i32 = arith.constant 3 : i32
    %113 = vector.broadcast %c3_i32 : i32 to vector<8x32xi32>
    %114 = arith.cmpi eq, %13, %113 : vector<8x32xi32>
    %115 = vector.shape_cast %112 : vector<1x32xf32> to vector<1x32xf32>
    %116 = vector.broadcast %115 : vector<1x32xf32> to vector<8x32xf32>
    %117 = arith.select %114, %116, %91 : vector<8x32xi1>, vector<8x32xf32>
    %118 = vector.extract_strided_slice %9 {offsets = [4, 0], sizes = [1, 128], strides = [1, 1]} : vector<8x128xf32> to vector<1x128xf32>
    %119 = arith.truncf %112 : vector<1x32xf32> to vector<1x32xbf16>
    %cst_26 = arith.constant dense<0.000000e+00> : vector<1x128xf32>
    %120 = tpu.matmul %119, %5, %cst_26 {dimension_numbers = #tpu.dot_dimension_numbers<[1], [0], [0], [1], [0, 0, 1, 1], [], []>} : vector<1x32xbf16>, vector<32x128xbf16>, vector<1x128xf32> -> vector<1x128xf32>
    %121 = arith.addf %118, %120 : vector<1x128xf32>
    %cst_27 = arith.constant 5.000000e-01 : f32
    %122 = vector.broadcast %cst_27 : f32 to vector<1x128xf32>
    %123 = arith.mulf %122, %121 : vector<1x128xf32>
    %124 = math.tanh %123 : vector<1x128xf32>
    %cst_28 = arith.constant 5.000000e-01 : f32
    %125 = vector.broadcast %cst_28 : f32 to vector<1x128xf32>
    %126 = arith.mulf %125, %124 : vector<1x128xf32>
    %cst_29 = arith.constant 5.000000e-01 : f32
    %127 = vector.broadcast %cst_29 : f32 to vector<1x128xf32>
    %128 = arith.addf %126, %127 : vector<1x128xf32>
    %129 = math.tanh %121 : vector<1x128xf32>
    %130 = vector.extract_strided_slice %128 {offsets = [0, 0], sizes = [1, 32], strides = [1, 1]} : vector<1x128xf32> to vector<1x32xf32>
    %131 = vector.extract_strided_slice %128 {offsets = [0, 32], sizes = [1, 32], strides = [1, 1]} : vector<1x128xf32> to vector<1x32xf32>
    %132 = vector.extract_strided_slice %128 {offsets = [0, 96], sizes = [1, 32], strides = [1, 1]} : vector<1x128xf32> to vector<1x32xf32>
    %133 = vector.extract_strided_slice %129 {offsets = [0, 64], sizes = [1, 32], strides = [1, 1]} : vector<1x128xf32> to vector<1x32xf32>
    %134 = arith.mulf %131, %110 : vector<1x32xf32>
    %135 = arith.mulf %130, %133 : vector<1x32xf32>
    %136 = arith.addf %134, %135 : vector<1x32xf32>
    %137 = math.tanh %136 : vector<1x32xf32>
    %138 = arith.mulf %132, %137 : vector<1x32xf32>
    %c4_i32 = arith.constant 4 : i32
    %139 = vector.broadcast %c4_i32 : i32 to vector<8x32xi32>
    %140 = arith.cmpi eq, %13, %139 : vector<8x32xi32>
    %141 = vector.shape_cast %138 : vector<1x32xf32> to vector<1x32xf32>
    %142 = vector.broadcast %141 : vector<1x32xf32> to vector<8x32xf32>
    %143 = arith.select %140, %142, %117 : vector<8x32xi1>, vector<8x32xf32>
    %144 = vector.extract_strided_slice %9 {offsets = [5, 0], sizes = [1, 128], strides = [1, 1]} : vector<8x128xf32> to vector<1x128xf32>
    %145 = arith.truncf %138 : vector<1x32xf32> to vector<1x32xbf16>
    %cst_30 = arith.constant dense<0.000000e+00> : vector<1x128xf32>
    %146 = tpu.matmul %145, %5, %cst_30 {dimension_numbers = #tpu.dot_dimension_numbers<[1], [0], [0], [1], [0, 0, 1, 1], [], []>} : vector<1x32xbf16>, vector<32x128xbf16>, vector<1x128xf32> -> vector<1x128xf32>
    %147 = arith.addf %144, %146 : vector<1x128xf32>
    %cst_31 = arith.constant 5.000000e-01 : f32
    %148 = vector.broadcast %cst_31 : f32 to vector<1x128xf32>
    %149 = arith.mulf %148, %147 : vector<1x128xf32>
    %150 = math.tanh %149 : vector<1x128xf32>
    %cst_32 = arith.constant 5.000000e-01 : f32
    %151 = vector.broadcast %cst_32 : f32 to vector<1x128xf32>
    %152 = arith.mulf %151, %150 : vector<1x128xf32>
    %cst_33 = arith.constant 5.000000e-01 : f32
    %153 = vector.broadcast %cst_33 : f32 to vector<1x128xf32>
    %154 = arith.addf %152, %153 : vector<1x128xf32>
    %155 = math.tanh %147 : vector<1x128xf32>
    %156 = vector.extract_strided_slice %154 {offsets = [0, 0], sizes = [1, 32], strides = [1, 1]} : vector<1x128xf32> to vector<1x32xf32>
    %157 = vector.extract_strided_slice %154 {offsets = [0, 32], sizes = [1, 32], strides = [1, 1]} : vector<1x128xf32> to vector<1x32xf32>
    %158 = vector.extract_strided_slice %154 {offsets = [0, 96], sizes = [1, 32], strides = [1, 1]} : vector<1x128xf32> to vector<1x32xf32>
    %159 = vector.extract_strided_slice %155 {offsets = [0, 64], sizes = [1, 32], strides = [1, 1]} : vector<1x128xf32> to vector<1x32xf32>
    %160 = arith.mulf %157, %136 : vector<1x32xf32>
    %161 = arith.mulf %156, %159 : vector<1x32xf32>
    %162 = arith.addf %160, %161 : vector<1x32xf32>
    %163 = math.tanh %162 : vector<1x32xf32>
    %164 = arith.mulf %158, %163 : vector<1x32xf32>
    %c5_i32 = arith.constant 5 : i32
    %165 = vector.broadcast %c5_i32 : i32 to vector<8x32xi32>
    %166 = arith.cmpi eq, %13, %165 : vector<8x32xi32>
    %167 = vector.shape_cast %164 : vector<1x32xf32> to vector<1x32xf32>
    %168 = vector.broadcast %167 : vector<1x32xf32> to vector<8x32xf32>
    %169 = arith.select %166, %168, %143 : vector<8x32xi1>, vector<8x32xf32>
    %170 = vector.extract_strided_slice %9 {offsets = [6, 0], sizes = [1, 128], strides = [1, 1]} : vector<8x128xf32> to vector<1x128xf32>
    %171 = arith.truncf %164 : vector<1x32xf32> to vector<1x32xbf16>
    %cst_34 = arith.constant dense<0.000000e+00> : vector<1x128xf32>
    %172 = tpu.matmul %171, %5, %cst_34 {dimension_numbers = #tpu.dot_dimension_numbers<[1], [0], [0], [1], [0, 0, 1, 1], [], []>} : vector<1x32xbf16>, vector<32x128xbf16>, vector<1x128xf32> -> vector<1x128xf32>
    %173 = arith.addf %170, %172 : vector<1x128xf32>
    %cst_35 = arith.constant 5.000000e-01 : f32
    %174 = vector.broadcast %cst_35 : f32 to vector<1x128xf32>
    %175 = arith.mulf %174, %173 : vector<1x128xf32>
    %176 = math.tanh %175 : vector<1x128xf32>
    %cst_36 = arith.constant 5.000000e-01 : f32
    %177 = vector.broadcast %cst_36 : f32 to vector<1x128xf32>
    %178 = arith.mulf %177, %176 : vector<1x128xf32>
    %cst_37 = arith.constant 5.000000e-01 : f32
    %179 = vector.broadcast %cst_37 : f32 to vector<1x128xf32>
    %180 = arith.addf %178, %179 : vector<1x128xf32>
    %181 = math.tanh %173 : vector<1x128xf32>
    %182 = vector.extract_strided_slice %180 {offsets = [0, 0], sizes = [1, 32], strides = [1, 1]} : vector<1x128xf32> to vector<1x32xf32>
    %183 = vector.extract_strided_slice %180 {offsets = [0, 32], sizes = [1, 32], strides = [1, 1]} : vector<1x128xf32> to vector<1x32xf32>
    %184 = vector.extract_strided_slice %180 {offsets = [0, 96], sizes = [1, 32], strides = [1, 1]} : vector<1x128xf32> to vector<1x32xf32>
    %185 = vector.extract_strided_slice %181 {offsets = [0, 64], sizes = [1, 32], strides = [1, 1]} : vector<1x128xf32> to vector<1x32xf32>
    %186 = arith.mulf %183, %162 : vector<1x32xf32>
    %187 = arith.mulf %182, %185 : vector<1x32xf32>
    %188 = arith.addf %186, %187 : vector<1x32xf32>
    %189 = math.tanh %188 : vector<1x32xf32>
    %190 = arith.mulf %184, %189 : vector<1x32xf32>
    %c6_i32 = arith.constant 6 : i32
    %191 = vector.broadcast %c6_i32 : i32 to vector<8x32xi32>
    %192 = arith.cmpi eq, %13, %191 : vector<8x32xi32>
    %193 = vector.shape_cast %190 : vector<1x32xf32> to vector<1x32xf32>
    %194 = vector.broadcast %193 : vector<1x32xf32> to vector<8x32xf32>
    %195 = arith.select %192, %194, %169 : vector<8x32xi1>, vector<8x32xf32>
    %196 = vector.extract_strided_slice %9 {offsets = [7, 0], sizes = [1, 128], strides = [1, 1]} : vector<8x128xf32> to vector<1x128xf32>
    %197 = arith.truncf %190 : vector<1x32xf32> to vector<1x32xbf16>
    %cst_38 = arith.constant dense<0.000000e+00> : vector<1x128xf32>
    %198 = tpu.matmul %197, %5, %cst_38 {dimension_numbers = #tpu.dot_dimension_numbers<[1], [0], [0], [1], [0, 0, 1, 1], [], []>} : vector<1x32xbf16>, vector<32x128xbf16>, vector<1x128xf32> -> vector<1x128xf32>
    %199 = arith.addf %196, %198 : vector<1x128xf32>
    %cst_39 = arith.constant 5.000000e-01 : f32
    %200 = vector.broadcast %cst_39 : f32 to vector<1x128xf32>
    %201 = arith.mulf %200, %199 : vector<1x128xf32>
    %202 = math.tanh %201 : vector<1x128xf32>
    %cst_40 = arith.constant 5.000000e-01 : f32
    %203 = vector.broadcast %cst_40 : f32 to vector<1x128xf32>
    %204 = arith.mulf %203, %202 : vector<1x128xf32>
    %cst_41 = arith.constant 5.000000e-01 : f32
    %205 = vector.broadcast %cst_41 : f32 to vector<1x128xf32>
    %206 = arith.addf %204, %205 : vector<1x128xf32>
    %207 = math.tanh %199 : vector<1x128xf32>
    %208 = vector.extract_strided_slice %206 {offsets = [0, 0], sizes = [1, 32], strides = [1, 1]} : vector<1x128xf32> to vector<1x32xf32>
    %209 = vector.extract_strided_slice %206 {offsets = [0, 32], sizes = [1, 32], strides = [1, 1]} : vector<1x128xf32> to vector<1x32xf32>
    %210 = vector.extract_strided_slice %206 {offsets = [0, 96], sizes = [1, 32], strides = [1, 1]} : vector<1x128xf32> to vector<1x32xf32>
    %211 = vector.extract_strided_slice %207 {offsets = [0, 64], sizes = [1, 32], strides = [1, 1]} : vector<1x128xf32> to vector<1x32xf32>
    %212 = arith.mulf %209, %188 : vector<1x32xf32>
    %213 = arith.mulf %208, %211 : vector<1x32xf32>
    %214 = arith.addf %212, %213 : vector<1x32xf32>
    %215 = math.tanh %214 : vector<1x32xf32>
    %216 = arith.mulf %210, %215 : vector<1x32xf32>
    %c7_i32 = arith.constant 7 : i32
    %217 = vector.broadcast %c7_i32 : i32 to vector<8x32xi32>
    %218 = arith.cmpi eq, %13, %217 : vector<8x32xi32>
    %219 = vector.shape_cast %216 : vector<1x32xf32> to vector<1x32xf32>
    %220 = vector.broadcast %219 : vector<1x32xf32> to vector<8x32xf32>
    %221 = arith.select %218, %220, %195 : vector<8x32xi1>, vector<8x32xf32>
    %222 = arith.truncf %221 : vector<8x32xf32> to vector<8x32xbf16>
    %cst_42 = arith.constant dense<0.000000e+00> : vector<8x8xf32>
    %223 = tpu.matmul %222, %222, %cst_42 {dimension_numbers = #tpu.dot_dimension_numbers<[1], [1], [0], [0], [0, 0, 1, 0], [], []>} : vector<8x32xbf16>, vector<8x32xbf16>, vector<8x8xf32> -> vector<8x8xf32>
    %224 = tpu.iota {dimensions = array<i32: 0>} : vector<8x8xi32>
    %225 = tpu.iota {dimensions = array<i32: 1>} : vector<8x8xi32>
    %226 = arith.cmpi sle, %225, %224 : vector<8x8xi32>
    %cst_43 = arith.constant -9.99999979E+10 : f32
    %227 = vector.broadcast %cst_43 : f32 to vector<8x8xf32>
    %228 = arith.select %226, %223, %227 : vector<8x8xi1>, vector<8x8xf32>
    %cst_44 = arith.constant dense<0xFF800000> : vector<8xf32>
    %229 = vector.multi_reduction <maximumf>, %228, %cst_44 [1] : vector<8x8xf32> to vector<8xf32>
    %230 = vector.shape_cast %229 : vector<8xf32> to vector<8x1xf32>
    %231 = vector.broadcast %230 : vector<8x1xf32> to vector<8x8xf32>
    %232 = arith.subf %228, %231 : vector<8x8xf32>
    %233 = math.exp %232 : vector<8x8xf32>
    %cst_45 = arith.constant dense<0.000000e+00> : vector<8xf32>
    %234 = vector.multi_reduction <add>, %233, %cst_45 [1] : vector<8x8xf32> to vector<8xf32>
    %235 = vector.shape_cast %234 : vector<8xf32> to vector<8x1xf32>
    %236 = tpu.reciprocal %235 {approx = true} : vector<8x1xf32> -> vector<8x1xf32>
    %237 = vector.broadcast %236 : vector<8x1xf32> to vector<8x8xf32>
    %238 = arith.mulf %233, %237 : vector<8x8xf32>
    %239 = arith.truncf %238 : vector<8x8xf32> to vector<8x8xbf16>
    %cst_46 = arith.constant dense<0.000000e+00> : vector<8x32xf32>
    %240 = tpu.matmul %239, %222, %cst_46 {dimension_numbers = #tpu.dot_dimension_numbers<[1], [0], [0], [1], [0, 0, 1, 1], [], []>} : vector<8x8xbf16>, vector<8x32xbf16>, vector<8x32xf32> -> vector<8x32xf32>
    %c0_47 = arith.constant 0 : index
    %c0_48 = arith.constant 0 : index
    %241 = vector.load %arg4[%c0_47, %c0_48] : memref<64x128xf32, #tpu.memory_space<vmem>>, vector<32x128xf32>
    %242 = arith.truncf %241 : vector<32x128xf32> to vector<32x128xbf16>
    %c32 = arith.constant 32 : index
    %c0_49 = arith.constant 0 : index
    %243 = vector.load %arg4[%c32, %c0_49] : memref<64x128xf32, #tpu.memory_space<vmem>>, vector<32x128xf32>
    %244 = arith.truncf %243 : vector<32x128xf32> to vector<32x128xbf16>
    %cst_50 = arith.constant dense<0.000000e+00> : vector<8x128xf32>
    %245 = tpu.matmul %222, %242, %cst_50 {dimension_numbers = #tpu.dot_dimension_numbers<[1], [0], [0], [1], [0, 0, 1, 1], [], []>} : vector<8x32xbf16>, vector<32x128xbf16>, vector<8x128xf32> -> vector<8x128xf32>
    %246 = arith.truncf %240 : vector<8x32xf32> to vector<8x32xbf16>
    %cst_51 = arith.constant dense<0.000000e+00> : vector<8x128xf32>
    %247 = tpu.matmul %246, %244, %cst_51 {dimension_numbers = #tpu.dot_dimension_numbers<[1], [0], [0], [1], [0, 0, 1, 1], [], []>} : vector<8x32xbf16>, vector<32x128xbf16>, vector<8x128xf32> -> vector<8x128xf32>
    %248 = arith.addf %245, %247 : vector<8x128xf32>
    %c0_52 = arith.constant 0 : index
    %c0_53 = arith.constant 0 : index
    %249 = vector.load %arg5[%c0_52, %c0_53] : memref<1x128xf32, #tpu.memory_space<vmem>>, vector<1x128xf32>
    %250 = vector.broadcast %249 : vector<1x128xf32> to vector<8x128xf32>
    %251 = arith.addf %248, %250 : vector<8x128xf32>
    %cst_54 = arith.constant dense<0xFF800000> : vector<8xf32>
    %252 = vector.multi_reduction <maximumf>, %251, %cst_54 [1] : vector<8x128xf32> to vector<8xf32>
    %253 = vector.shape_cast %252 : vector<8xf32> to vector<8x1xf32>
    %254 = vector.broadcast %253 : vector<8x1xf32> to vector<8x128xf32>
    %255 = arith.subf %251, %254 : vector<8x128xf32>
    %256 = math.exp %255 : vector<8x128xf32>
    %cst_55 = arith.constant dense<0.000000e+00> : vector<8xf32>
    %257 = vector.multi_reduction <add>, %256, %cst_55 [1] : vector<8x128xf32> to vector<8xf32>
    %258 = vector.shape_cast %257 : vector<8xf32> to vector<8x1xf32>
    %259 = math.log %258 : vector<8x1xf32>
    %260 = vector.broadcast %259 : vector<8x1xf32> to vector<8x128xf32>
    %261 = arith.subf %255, %260 : vector<8x128xf32>
    %c0_56 = arith.constant 0 : index
    %c0_57 = arith.constant 0 : index
    %262 = vector.load %arg6[%c0_56, %c0_57] : memref<8x128xf32, #tpu.memory_space<vmem>>, vector<8x128xf32>
    tpu.vector_store %arg6[%c0_56, %c0_57], %261 {strides = array<i32>} : memref<8x128xf32, #tpu.memory_space<vmem>>, vector<8x128xf32>,
    return
  }
}

</mosaic_0001>

<llo_original>
// kernel: tpu_custom_call.1
$region0: #{tpu_custom_call.1}
  #allocation0 [shape = 'u32[]', space=smem, size = 0x4, offset = 0x4, fixed_abs, tag = 'smem constant byte address 0x4 - core index']
  #allocation1 [shape = 'u32[144,128]{1,0:T(1,128)}', space=vmem, size = 0x12000, scoped, tag = 'internal scratch']
  %s0 = inlined_call_operand.hbm [shape: f32[8,32], index: 0, kind: input, shape index: {}]
  %s1 = inlined_call_operand.hbm [shape: f32[32,128], index: 1, kind: input, shape index: {}]
  %s2 = inlined_call_operand.hbm [shape: f32[32,128], index: 2, kind: input, shape index: {}]
  %s3 = inlined_call_operand.vmem [shape: f32[1,128], index: 3, kind: input, shape index: {}]
  %s4 = inlined_call_operand.hbm [shape: f32[64,128], index: 4, kind: input, shape index: {}]
  %s5 = inlined_call_operand.vmem [shape: f32[1,128], index: 5, kind: input, shape index: {}]
  %s6 = inlined_call_operand.hbm [shape: f32[8,128], index: 6, kind: output, shape index: {}]
  %s7 = sld [smem:[#allocation0]]
  $region50: #{tpu_custom_call.1} parent=0
    _
  %s9 = ssub.s32 1, %s7
  %s10 = scalar_select 0, %s9, %s7
  $region1: #{tpu_custom_call.1} parent=0
    #allocation2 [shape = 'u8[4096]{0}', space=vmem, size = 0x1000, scoped, tag = 'input window, operand 0, single buffered']
    #allocation3 [shape = 's32[1]{0}', space=sflag, size = 0x4, scoped, tag = 'scoped memory for tpu_custom_call.1']
    #allocation4 [shape = 's32[1]{0}', space=sflag, size = 0x4, scoped, tag = 'scoped memory for tpu_custom_call.1']
    #allocation5 [shape = 'u8[16384]{0}', space=vmem, size = 0x4000, scoped, tag = 'input window, operand 1, single buffered']
    #allocation6 [shape = 's32[1]{0}', space=sflag, size = 0x4, scoped, tag = 'scoped memory for tpu_custom_call.1']
    #allocation7 [shape = 'u8[16384]{0}', space=vmem, size = 0x4000, scoped, tag = 'input window, operand 2, single buffered']
    #allocation8 [shape = 'u8[32768]{0}', space=vmem, size = 0x8000, scoped, tag = 'input window, operand 4, single buffered']
    #allocation9 [shape = 's32[1]{0}', space=sflag, size = 0x4, scoped, tag = 'scoped memory for tpu_custom_call.1']
    #allocation10 [shape = 'u8[4096]{0}', space=vmem, size = 0x1000, scoped, tag = 'output window, operand 0, single buffered']
    %11 = vsyncpa [#allocation3], 0
    %12 = vsyncpa [#allocation6], 0
    %13 = vsyncpa [#allocation9], 0
    %14 = vsyncpa [#allocation4], 0
    // Predicated region
    $region2: #{tpu_custom_call.1} parent=1 // pred_check
      _
    $region3: #{tpu_custom_call.1} parent=1 // pred_check_branch
      %16 = sbr.rel (0) target = $region5
    $region4: #{tpu_custom_call.1} parent=1 // pred_region
      %s18 = ssub.s32 128, 128
      %19 = vsyncadd [#allocation3], %s18
      %s21 = sshll.u32 [#allocation2], 4
      %s22 = int_to_ptr.vmem [resolvable:$true] %s21
      %24 = dma.hbm_to_vmem [thread:$0]  %s0, 128, %s22, [#allocation3]
    $region5: #{tpu_custom_call.1} parent=1 // pred_fallthru
      _
    // Predicated region
    $region6: #{tpu_custom_call.1} parent=1 // pred_check
      _
    $region7: #{tpu_custom_call.1} parent=1 // pred_check_branch
      %26 = sbr.rel (0) target = $region9
    $region8: #{tpu_custom_call.1} parent=1 // pred_region
      %s28 = ssub.s32 512, 512
      %29 = vsyncadd [#allocation6], %s28
      %s30 = sshll.u32 [#allocation5], 4
      %s31 = int_to_ptr.vmem [resolvable:$true] %s30
      %36 = dma.hbm_to_vmem [thread:$0]  %s1, 512, %s31, [#allocation6], 128, 128, 8
    $region9: #{tpu_custom_call.1} parent=1 // pred_fallthru
      _
    // Predicated region
    $region10: #{tpu_custom_call.1} parent=1 // pred_check
      _
    $region11: #{tpu_custom_call.1} parent=1 // pred_check_branch
      %38 = sbr.rel (0) target = $region13
    $region12: #{tpu_custom_call.1} parent=1 // pred_region
      %s40 = ssub.s32 512, 512
      %41 = vsyncadd [#allocation6], %s40
      %s42 = sshll.u32 [#allocation7], 4
      %s43 = int_to_ptr.vmem [resolvable:$true] %s42
      %48 = dma.hbm_to_vmem [thread:$0]  %s2, 512, %s43, [#allocation6], 128, 128, 8
    $region13: #{tpu_custom_call.1} parent=1 // pred_fallthru
      _
    // Predicated region
    $region14: #{tpu_custom_call.1} parent=1 // pred_check
      _
    $region15: #{tpu_custom_call.1} parent=1 // pred_check_branch
      %50 = sbr.rel (0) target = $region17
    $region16: #{tpu_custom_call.1} parent=1 // pred_region
      _
    $region17: #{tpu_custom_call.1} parent=1 // pred_fallthru
      _
    // Predicated region
    $region18: #{tpu_custom_call.1} parent=1 // pred_check
      _
    $region19: #{tpu_custom_call.1} parent=1 // pred_check_branch
      %52 = sbr.rel (0) target = $region21
    $region20: #{tpu_custom_call.1} parent=1 // pred_region
      %s54 = ssub.s32 1024, 1024
      %55 = vsyncadd [#allocation9], %s54
      %s56 = sshll.u32 [#allocation8], 4
      %s57 = int_to_ptr.vmem [resolvable:$true] %s56
      %62 = dma.hbm_to_vmem [thread:$0]  %s4, 1024, %s57, [#allocation9], 128, 128, 8
    $region21: #{tpu_custom_call.1} parent=1 // pred_fallthru
      _
    // Predicated region
    $region22: #{tpu_custom_call.1} parent=1 // pred_check
      _
    $region23: #{tpu_custom_call.1} parent=1 // pred_check_branch
      %64 = sbr.rel (0) target = $region25
    $region24: #{tpu_custom_call.1} parent=1 // pred_region
      _
    $region25: #{tpu_custom_call.1} parent=1 // pred_fallthru
      _
    // Predicated region
    $region26: #{tpu_custom_call.1} parent=1 // pred_check
      _
    $region27: #{tpu_custom_call.1} parent=1 // pred_check_branch
      %66 = sbr.rel (0) target = $region29
    $region28: #{tpu_custom_call.1} parent=1 // pred_region
      %67 = dma.done [#allocation3], 128
    $region29: #{tpu_custom_call.1} parent=1 // pred_fallthru
      _
    // Predicated region
    $region30: #{tpu_custom_call.1} parent=1 // pred_check
      _
    $region31: #{tpu_custom_call.1} parent=1 // pred_check_branch
      %69 = sbr.rel (0) target = $region33
    $region32: #{tpu_custom_call.1} parent=1 // pred_region
      %70 = dma.done [#allocation6], 512
    $region33: #{tpu_custom_call.1} parent=1 // pred_fallthru
      _
    // Predicated region
    $region34: #{tpu_custom_call.1} parent=1 // pred_check
      _
    $region35: #{tpu_custom_call.1} parent=1 // pred_check_branch
      %72 = sbr.rel (0) target = $region37
    $region36: #{tpu_custom_call.1} parent=1 // pred_region
      %73 = dma.done [#allocation6], 512
    $region37: #{tpu_custom_call.1} parent=1 // pred_fallthru
      _
    // Predicated region
    $region38: #{tpu_custom_call.1} parent=1 // pred_check
      _
    $region39: #{tpu_custom_call.1} parent=1 // pred_check_branch
      %75 = sbr.rel (0) target = $region41
    $region40: #{tpu_custom_call.1} parent=1 // pred_region
      %76 = dma.done [#allocation9], 1024
    $region41: #{tpu_custom_call.1} parent=1 // pred_fallthru
      _
    %v78 = vld [vmem:[#allocation2] sm:$0xff]
    %v79 = vpack.c.bf16 %v78, %v78
    %v80 = vld [vmem:[#allocation5] sm:$0xff]
    %v81 = vld [vmem:[#allocation5 + $0x8] sm:$0xff]
    %v82 = vld [vmem:[#allocation5 + $0x10] sm:$0xff]
    %v83 = vld [vmem:[#allocation5 + $0x18] sm:$0xff]
    %v84 = vpack.c.bf16 %v81, %v80
    %v85 = vpack.c.bf16 %v83, %v82
    %v86 = vld [vmem:[#allocation7] sm:$0xff]
    %v87 = vld [vmem:[#allocation7 + $0x8] sm:$0xff]
    %v88 = vld [vmem:[#allocation7 + $0x10] sm:$0xff]
    %v89 = vld [vmem:[#allocation7 + $0x18] sm:$0xff]
    %v90 = vpack.c.bf16 %v87, %v86
    %v91 = vpack.c.bf16 %v89, %v88
    %v92 = vld [vmem:[%s3] sm:$0x1]
    %v94 = vlaneseq
    %v95 = vshrl.u32 %v94, 7
    %v96 = vsub.s32 0, %v95
    %v97 = vrot.slane %v92, %v96
    %vm99 = vcmask 261120
    %v101 = vsel %vm99, %v79, 0
    %103 = vmatprep.subr.bf16.mxu0 0
    %104 = vmatpush1.bf16.msra.mxu0 %v84
    %105 = vmatprep.subr.bf16.mxu0 0
    %106 = vmatpush1.bf16.msra.mxu0 %v85
    %107 = vmatprep.subr.bf16.mxu0 0
    %108 = vmatpush1.bf16.msra.mxu0 0
    %109 = vmatprep.subr.bf16.mxu0 0
    %110 = vmatpush1.bf16.msra.mxu0 0
    %111 = vmatprep.subr.bf16.mxu0 0
    %112 = vmatpush1.bf16.msra.mxu0 0
    %113 = vmatprep.subr.bf16.mxu0 0
    %114 = vmatpush1.bf16.msra.mxu0 0
    %115 = vmatprep.subr.bf16.mxu0 0
    %116 = vmatpush1.bf16.msra.mxu0 0
    %117 = vmatprep.subr.bf16.mxu0 0
    %118 = vmatpush1.bf16.msra.mxu0 0
    %119 = vmatprep.subr.bf16.mxu0 0
    %120 = vmatpush1.bf16.msra.mxu0 0
    %121 = vmatprep.subr.bf16.mxu0 0
    %122 = vmatpush1.bf16.msra.mxu0 0
    %123 = vmatprep.subr.bf16.mxu0 0
    %124 = vmatpush1.bf16.msra.mxu0 0
    %125 = vmatprep.subr.bf16.mxu0 0
    %126 = vmatpush1.bf16.msra.mxu0 0
    %127 = vmatprep.subr.bf16.mxu0 0
    %128 = vmatpush1.bf16.msra.mxu0 0
    %129 = vmatprep.subr.bf16.mxu0 0
    %130 = vmatpush1.bf16.msra.mxu0 0
    %131 = vmatprep.subr.bf16.mxu0 0
    %132 = vmatpush1.bf16.msra.mxu0 0
    %133 = vmatprep.subr.bf16.mxu0 0
    %134 = vmatpush1.bf16.msra.mxu0 0
    %135 = vmatprep.mubr.bf16.mxu0 0
    %136 = vmatmul.mubr.bf16.gmra.mrb[0].mxu0 %v101
    %v137 = vpop.f32.mrb[0].mxu0
    %v138 = vadd.f32 %v97, %v137
    %v139 = vpop.f32.mrb[0].mxu0
    %v140 = vpop.f32.mrb[0].mxu0
    %v141 = vpop.f32.mrb[0].mxu0
    %142 = vdwg.mxu0
    %v143 = vlaneseq
    %v144 = vshrl.u32 %v143, 7
    %v146 = vsel %vm99, 0, 0
    %148 = vmatprep.subr.bf16.mxu0 0
    %149 = vmatpush1.bf16.msra.mxu0 %v90
    %150 = vmatprep.subr.bf16.mxu0 0
    %151 = vmatpush1.bf16.msra.mxu0 %v91
    %152 = vmatprep.subr.bf16.mxu0 0
    %153 = vmatpush1.bf16.msra.mxu0 0
    %154 = vmatprep.subr.bf16.mxu0 0
    %155 = vmatpush1.bf16.msra.mxu0 0
    %156 = vmatprep.subr.bf16.mxu0 0
    %157 = vmatpush1.bf16.msra.mxu0 0
    %158 = vmatprep.subr.bf16.mxu0 0
    %159 = vmatpush1.bf16.msra.mxu0 0
    %160 = vmatprep.subr.bf16.mxu0 0
    %161 = vmatpush1.bf16.msra.mxu0 0
    %162 = vmatprep.subr.bf16.mxu0 0
    %163 = vmatpush1.bf16.msra.mxu0 0
    %164 = vmatprep.subr.bf16.mxu0 0
    %165 = vmatpush1.bf16.msra.mxu0 0
    %166 = vmatprep.subr.bf16.mxu0 0
    %167 = vmatpush1.bf16.msra.mxu0 0
    %168 = vmatprep.subr.bf16.mxu0 0
    %169 = vmatpush1.bf16.msra.mxu0 0
    %170 = vmatprep.subr.bf16.mxu0 0
    %171 = vmatpush1.bf16.msra.mxu0 0
    %172 = vmatprep.subr.bf16.mxu0 0
    %173 = vmatpush1.bf16.msra.mxu0 0
    %174 = vmatprep.subr.bf16.mxu0 0
    %175 = vmatpush1.bf16.msra.mxu0 0
    %176 = vmatprep.subr.bf16.mxu0 0
    %177 = vmatpush1.bf16.msra.mxu0 0
    %178 = vmatprep.subr.bf16.mxu0 0
    %179 = vmatpush1.bf16.msra.mxu0 0
    %180 = vmatprep.mubr.bf16.mxu0 0
    %181 = vmatmul.mubr.bf16.gmra.mrb[0].mxu0 %v146
    %v182 = vpop.f32.mrb[0].mxu0
    %v183 = vadd.f32 0.0, %v182
    %v184 = vpop.f32.mrb[0].mxu0
    %v185 = vpop.f32.mrb[0].mxu0
    %v186 = vpop.f32.mrb[0].mxu0
    %187 = vdwg.mxu0
    %v188 = vadd.f32 %v138, %v183
    %v189 = vmul.f32 %v188, 0.5
    %v190 = vtanh.pop %v189
    %v191 = vmul.f32 %v190, 0.5
    %v192 = vadd.f32 %v191, 0.5
    %v193 = vtanh.pop %v188
    %v194 = vmul.f32 %v192, 0.0
    %196 = vrot.lane.b32.xlu0 %v193, 64
    %v197 = vpop.permute.xlu0 %196
    %v199 = vmul.f32 %v192, %v197
    %201 = vrot.lane.b32.xlu0 %v199, 32
    %v202 = vpop.permute.xlu0 %201
    %v204 = vadd.f32 %v194, %v202
    %v205 = vtanh.pop %v204
    %207 = vrot.lane.b32.xlu0 %v205, 64
    %v208 = vpop.permute.xlu0 %207
    %v210 = vmul.f32 %v192, %v208
    %vm211 = vcmp.eq.s32.totalorder %v144, 0
    %v212 = vlaneseq
    %v213 = vshrl.u32 %v212, 7
    %v214 = vsub.s32 0, %v213
    %v215 = vrot.slane %v210, %v214
    %v216 = vsel %vm211, %v215, 0.0
    %v217 = vpack.c.bf16 %v210, %v210
    %219 = vrot.lane.b32.xlu0 %v217, 32
    %v220 = vpop.permute.xlu0 %219
    %v222 = vsel %vm99, %v220, 0
    %224 = vmatprep.subr.bf16.mxu0 0
    %225 = vmatpush1.bf16.msra.mxu0 %v90
    %226 = vmatprep.subr.bf16.mxu0 0
    %227 = vmatpush1.bf16.msra.mxu0 %v91
    %228 = vmatprep.subr.bf16.mxu0 0
    %229 = vmatpush1.bf16.msra.mxu0 0
    %230 = vmatprep.subr.bf16.mxu0 0
    %231 = vmatpush1.bf16.msra.mxu0 0
    %232 = vmatprep.subr.bf16.mxu0 0
    %233 = vmatpush1.bf16.msra.mxu0 0
    %234 = vmatprep.subr.bf16.mxu0 0
    %235 = vmatpush1.bf16.msra.mxu0 0
    %236 = vmatprep.subr.bf16.mxu0 0
    %237 = vmatpush1.bf16.msra.mxu0 0
    %238 = vmatprep.subr.bf16.mxu0 0
    %239 = vmatpush1.bf16.msra.mxu0 0
    %240 = vmatprep.subr.bf16.mxu0 0
    %241 = vmatpush1.bf16.msra.mxu0 0
    %242 = vmatprep.subr.bf16.mxu0 0
    %243 = vmatpush1.bf16.msra.mxu0 0
    %244 = vmatprep.subr.bf16.mxu0 0
    %245 = vmatpush1.bf16.msra.mxu0 0
    %246 = vmatprep.subr.bf16.mxu0 0
    %247 = vmatpush1.bf16.msra.mxu0 0
    %248 = vmatprep.subr.bf16.mxu0 0
    %249 = vmatpush1.bf16.msra.mxu0 0
    %250 = vmatprep.subr.bf16.mxu0 0
    %251 = vmatpush1.bf16.msra.mxu0 0
    %252 = vmatprep.subr.bf16.mxu0 0
    %253 = vmatpush1.bf16.msra.mxu0 0
    %254 = vmatprep.subr.bf16.mxu0 0
    %255 = vmatpush1.bf16.msra.mxu0 0
    %256 = vmatprep.mubr.bf16.mxu0 0
    %257 = vmatmul.mubr.bf16.gmra.mrb[0].mxu0 %v222
    %v258 = vpop.f32.mrb[0].mxu0
    %v259 = vadd.f32 0.0, %v258
    %v260 = vpop.f32.mrb[0].mxu0
    %v261 = vpop.f32.mrb[0].mxu0
    %v262 = vpop.f32.mrb[0].mxu0
    %263 = vdwg.mxu0
    %v265 = vrot.slane %v259, 7
    %v267 = vadd.f32 %v138, %v265
    %v268 = vmul.f32 %v267, 0.5
    %v269 = vtanh.pop %v268
    %v270 = vmul.f32 %v269, 0.5
    %v271 = vadd.f32 %v270, 0.5
    %v272 = vtanh.pop %v267
    %v274 = vrot.slane %v204, 7
    %v276 = vmul.f32 %v271, %v274
    %278 = vrot.lane.b32.xlu0 %v272, 64
    %v279 = vpop.permute.xlu0 %278
    %v281 = vmul.f32 %v271, %v279
    %283 = vrot.lane.b32.xlu0 %v281, 32
    %v284 = vpop.permute.xlu0 %283
    %v286 = vadd.f32 %v276, %v284
    %v287 = vtanh.pop %v286
    %289 = vrot.lane.b32.xlu0 %v287, 64
    %v290 = vpop.permute.xlu0 %289
    %v292 = vmul.f32 %v271, %v290
    %vm293 = vcmp.eq.s32.totalorder %v144, 1
    %v294 = vlaneseq
    %v295 = vshrl.u32 %v294, 7
    %v296 = vsub.s32 1, %v295
    %v297 = vrot.slane %v292, %v296
    %v298 = vsel %vm293, %v297, %v216
    %v299 = vpack.c.bf16 %v292, %v292
    %v301 = vshrl.u32 %v299, 16
    %303 = vrot.lane.b32.xlu0 %v301, 32
    %v304 = vpop.permute.xlu0 %303
    %v306 = vsel %vm99, %v304, 0
    %308 = vmatprep.subr.bf16.mxu0 0
    %309 = vmatpush1.bf16.msra.mxu0 %v90
    %310 = vmatprep.subr.bf16.mxu0 0
    %311 = vmatpush1.bf16.msra.mxu0 %v91
    %312 = vmatprep.subr.bf16.mxu0 0
    %313 = vmatpush1.bf16.msra.mxu0 0
    %314 = vmatprep.subr.bf16.mxu0 0
    %315 = vmatpush1.bf16.msra.mxu0 0
    %316 = vmatprep.subr.bf16.mxu0 0
    %317 = vmatpush1.bf16.msra.mxu0 0
    %318 = vmatprep.subr.bf16.mxu0 0
    %319 = vmatpush1.bf16.msra.mxu0 0
    %320 = vmatprep.subr.bf16.mxu0 0
    %321 = vmatpush1.bf16.msra.mxu0 0
    %322 = vmatprep.subr.bf16.mxu0 0
    %323 = vmatpush1.bf16.msra.mxu0 0
    %324 = vmatprep.subr.bf16.mxu0 0
    %325 = vmatpush1.bf16.msra.mxu0 0
    %326 = vmatprep.subr.bf16.mxu0 0
    %327 = vmatpush1.bf16.msra.mxu0 0
    %328 = vmatprep.subr.bf16.mxu0 0
    %329 = vmatpush1.bf16.msra.mxu0 0
    %330 = vmatprep.subr.bf16.mxu0 0
    %331 = vmatpush1.bf16.msra.mxu0 0
    %332 = vmatprep.subr.bf16.mxu0 0
    %333 = vmatpush1.bf16.msra.mxu0 0
    %334 = vmatprep.subr.bf16.mxu0 0
    %335 = vmatpush1.bf16.msra.mxu0 0
    %336 = vmatprep.subr.bf16.mxu0 0
    %337 = vmatpush1.bf16.msra.mxu0 0
    %338 = vmatprep.subr.bf16.mxu0 0
    %339 = vmatpush1.bf16.msra.mxu0 0
    %340 = vmatprep.mubr.bf16.mxu0 0
    %341 = vmatmul.mubr.bf16.gmra.mrb[0].mxu0 %v306
    %v342 = vpop.f32.mrb[0].mxu0
    %v343 = vadd.f32 0.0, %v342
    %v344 = vpop.f32.mrb[0].mxu0
    %v345 = vpop.f32.mrb[0].mxu0
    %v346 = vpop.f32.mrb[0].mxu0
    %347 = vdwg.mxu0
    %v349 = vrot.slane %v343, 6
    %v351 = vadd.f32 %v138, %v349
    %v352 = vmul.f32 %v351, 0.5
    %v353 = vtanh.pop %v352
    %v354 = vmul.f32 %v353, 0.5
    %v355 = vadd.f32 %v354, 0.5
    %v356 = vtanh.pop %v351
    %v358 = vrot.slane %v286, 7
    %v360 = vmul.f32 %v355, %v358
    %362 = vrot.lane.b32.xlu0 %v356, 64
    %v363 = vpop.permute.xlu0 %362
    %v365 = vmul.f32 %v355, %v363
    %367 = vrot.lane.b32.xlu0 %v365, 32
    %v368 = vpop.permute.xlu0 %367
    %v370 = vadd.f32 %v360, %v368
    %v371 = vtanh.pop %v370
    %373 = vrot.lane.b32.xlu0 %v371, 64
    %v374 = vpop.permute.xlu0 %373
    %v376 = vmul.f32 %v355, %v374
    %vm377 = vcmp.eq.s32.totalorder %v144, 2
    %v378 = vlaneseq
    %v379 = vshrl.u32 %v378, 7
    %v380 = vsub.s32 2, %v379
    %v381 = vrot.slane %v376, %v380
    %v382 = vsel %vm377, %v381, %v298
    %v383 = vpack.c.bf16 %v376, %v376
    %v385 = vrot.slane %v383, 1
    %386 = vrot.lane.b32.xlu0 %v385, 32
    %v387 = vpop.permute.xlu0 %386
    %v389 = vsel %vm99, %v387, 0
    %391 = vmatprep.subr.bf16.mxu0 0
    %392 = vmatpush1.bf16.msra.mxu0 %v90
    %393 = vmatprep.subr.bf16.mxu0 0
    %394 = vmatpush1.bf16.msra.mxu0 %v91
    %395 = vmatprep.subr.bf16.mxu0 0
    %396 = vmatpush1.bf16.msra.mxu0 0
    %397 = vmatprep.subr.bf16.mxu0 0
    %398 = vmatpush1.bf16.msra.mxu0 0
    %399 = vmatprep.subr.bf16.mxu0 0
    %400 = vmatpush1.bf16.msra.mxu0 0
    %401 = vmatprep.subr.bf16.mxu0 0
    %402 = vmatpush1.bf16.msra.mxu0 0
    %403 = vmatprep.subr.bf16.mxu0 0
    %404 = vmatpush1.bf16.msra.mxu0 0
    %405 = vmatprep.subr.bf16.mxu0 0
    %406 = vmatpush1.bf16.msra.mxu0 0
    %407 = vmatprep.subr.bf16.mxu0 0
    %408 = vmatpush1.bf16.msra.mxu0 0
    %409 = vmatprep.subr.bf16.mxu0 0
    %410 = vmatpush1.bf16.msra.mxu0 0
    %411 = vmatprep.subr.bf16.mxu0 0
    %412 = vmatpush1.bf16.msra.mxu0 0
    %413 = vmatprep.subr.bf16.mxu0 0
    %414 = vmatpush1.bf16.msra.mxu0 0
    %415 = vmatprep.subr.bf16.mxu0 0
    %416 = vmatpush1.bf16.msra.mxu0 0
    %417 = vmatprep.subr.bf16.mxu0 0
    %418 = vmatpush1.bf16.msra.mxu0 0
    %419 = vmatprep.subr.bf16.mxu0 0
    %420 = vmatpush1.bf16.msra.mxu0 0
    %421 = vmatprep.subr.bf16.mxu0 0
    %422 = vmatpush1.bf16.msra.mxu0 0
    %423 = vmatprep.mubr.bf16.mxu0 0
    %424 = vmatmul.mubr.bf16.gmra.mrb[0].mxu0 %v389
    %v425 = vpop.f32.mrb[0].mxu0
    %v426 = vadd.f32 0.0, %v425
    %v427 = vpop.f32.mrb[0].mxu0
    %v428 = vpop.f32.mrb[0].mxu0
    %v429 = vpop.f32.mrb[0].mxu0
    %430 = vdwg.mxu0
    %v432 = vrot.slane %v426, 5
    %v434 = vadd.f32 %v138, %v432
    %v435 = vmul.f32 %v434, 0.5
    %v436 = vtanh.pop %v435
    %v437 = vmul.f32 %v436, 0.5
    %v438 = vadd.f32 %v437, 0.5
    %v439 = vtanh.pop %v434
    %v441 = vrot.slane %v370, 7
    %v443 = vmul.f32 %v438, %v441
    %445 = vrot.lane.b32.xlu0 %v439, 64
    %v446 = vpop.permute.xlu0 %445
    %v448 = vmul.f32 %v438, %v446
    %450 = vrot.lane.b32.xlu0 %v448, 32
    %v451 = vpop.permute.xlu0 %450
    %v453 = vadd.f32 %v443, %v451
    %v454 = vtanh.pop %v453
    %456 = vrot.lane.b32.xlu0 %v454, 64
    %v457 = vpop.permute.xlu0 %456
    %v459 = vmul.f32 %v438, %v457
    %vm460 = vcmp.eq.s32.totalorder %v144, 3
    %v461 = vlaneseq
    %v462 = vshrl.u32 %v461, 7
    %v463 = vsub.s32 3, %v462
    %v464 = vrot.slane %v459, %v463
    %v465 = vsel %vm460, %v464, %v382
    %v466 = vpack.c.bf16 %v459, %v459
    %v468 = vshrl.u32 %v466, 16
    %v470 = vrot.slane %v468, 1
    %471 = vrot.lane.b32.xlu0 %v470, 32
    %v472 = vpop.permute.xlu0 %471
    %v474 = vsel %vm99, %v472, 0
    %476 = vmatprep.subr.bf16.mxu0 0
    %477 = vmatpush1.bf16.msra.mxu0 %v90
    %478 = vmatprep.subr.bf16.mxu0 0
    %479 = vmatpush1.bf16.msra.mxu0 %v91
    %480 = vmatprep.subr.bf16.mxu0 0
    %481 = vmatpush1.bf16.msra.mxu0 0
    %482 = vmatprep.subr.bf16.mxu0 0
    %483 = vmatpush1.bf16.msra.mxu0 0
    %484 = vmatprep.subr.bf16.mxu0 0
    %485 = vmatpush1.bf16.msra.mxu0 0
    %486 = vmatprep.subr.bf16.mxu0 0
    %487 = vmatpush1.bf16.msra.mxu0 0
    %488 = vmatprep.subr.bf16.mxu0 0
    %489 = vmatpush1.bf16.msra.mxu0 0
    %490 = vmatprep.subr.bf16.mxu0 0
    %491 = vmatpush1.bf16.msra.mxu0 0
    %492 = vmatprep.subr.bf16.mxu0 0
    %493 = vmatpush1.bf16.msra.mxu0 0
    %494 = vmatprep.subr.bf16.mxu0 0
    %495 = vmatpush1.bf16.msra.mxu0 0
    %496 = vmatprep.subr.bf16.mxu0 0
    %497 = vmatpush1.bf16.msra.mxu0 0
    %498 = vmatprep.subr.bf16.mxu0 0
    %499 = vmatpush1.bf16.msra.mxu0 0
    %500 = vmatprep.subr.bf16.mxu0 0
    %501 = vmatpush1.bf16.msra.mxu0 0
    %502 = vmatprep.subr.bf16.mxu0 0
    %503 = vmatpush1.bf16.msra.mxu0 0
    %504 = vmatprep.subr.bf16.mxu0 0
    %505 = vmatpush1.bf16.msra.mxu0 0
    %506 = vmatprep.subr.bf16.mxu0 0
    %507 = vmatpush1.bf16.msra.mxu0 0
    %508 = vmatprep.mubr.bf16.mxu0 0
    %509 = vmatmul.mubr.bf16.gmra.mrb[0].mxu0 %v474
    %v510 = vpop.f32.mrb[0].mxu0
    %v511 = vadd.f32 0.0, %v510
    %v512 = vpop.f32.mrb[0].mxu0
    %v513 = vpop.f32.mrb[0].mxu0
    %v514 = vpop.f32.mrb[0].mxu0
    %515 = vdwg.mxu0
    %v517 = vrot.slane %v511, 4
    %v519 = vadd.f32 %v138, %v517
    %v520 = vmul.f32 %v519, 0.5
    %v521 = vtanh.pop %v520
    %v522 = vmul.f32 %v521, 0.5
    %v523 = vadd.f32 %v522, 0.5
    %v524 = vtanh.pop %v519
    %v526 = vrot.slane %v453, 7
    %v528 = vmul.f32 %v523, %v526
    %530 = vrot.lane.b32.xlu0 %v524, 64
    %v531 = vpop.permute.xlu0 %530
    %v533 = vmul.f32 %v523, %v531
    %535 = vrot.lane.b32.xlu0 %v533, 32
    %v536 = vpop.permute.xlu0 %535
    %v538 = vadd.f32 %v528, %v536
    %v539 = vtanh.pop %v538
    %541 = vrot.lane.b32.xlu0 %v539, 64
    %v542 = vpop.permute.xlu0 %541
    %v544 = vmul.f32 %v523, %v542
    %vm545 = vcmp.eq.s32.totalorder %v144, 4
    %v546 = vlaneseq
    %v547 = vshrl.u32 %v546, 7
    %v548 = vsub.s32 4, %v547
    %v549 = vrot.slane %v544, %v548
    %v550 = vsel %vm545, %v549, %v465
    %v551 = vpack.c.bf16 %v544, %v544
    %v553 = vrot.slane %v551, 2
    %554 = vrot.lane.b32.xlu0 %v553, 32
    %v555 = vpop.permute.xlu0 %554
    %v557 = vsel %vm99, %v555, 0
    %559 = vmatprep.subr.bf16.mxu0 0
    %560 = vmatpush1.bf16.msra.mxu0 %v90
    %561 = vmatprep.subr.bf16.mxu0 0
    %562 = vmatpush1.bf16.msra.mxu0 %v91
    %563 = vmatprep.subr.bf16.mxu0 0
    %564 = vmatpush1.bf16.msra.mxu0 0
    %565 = vmatprep.subr.bf16.mxu0 0
    %566 = vmatpush1.bf16.msra.mxu0 0
    %567 = vmatprep.subr.bf16.mxu0 0
    %568 = vmatpush1.bf16.msra.mxu0 0
    %569 = vmatprep.subr.bf16.mxu0 0
    %570 = vmatpush1.bf16.msra.mxu0 0
    %571 = vmatprep.subr.bf16.mxu0 0
    %572 = vmatpush1.bf16.msra.mxu0 0
    %573 = vmatprep.subr.bf16.mxu0 0
    %574 = vmatpush1.bf16.msra.mxu0 0
    %575 = vmatprep.subr.bf16.mxu0 0
    %576 = vmatpush1.bf16.msra.mxu0 0
    %577 = vmatprep.subr.bf16.mxu0 0
    %578 = vmatpush1.bf16.msra.mxu0 0
    %579 = vmatprep.subr.bf16.mxu0 0
    %580 = vmatpush1.bf16.msra.mxu0 0
    %581 = vmatprep.subr.bf16.mxu0 0
    %582 = vmatpush1.bf16.msra.mxu0 0
    %583 = vmatprep.subr.bf16.mxu0 0
    %584 = vmatpush1.bf16.msra.mxu0 0
    %585 = vmatprep.subr.bf16.mxu0 0
    %586 = vmatpush1.bf16.msra.mxu0 0
    %587 = vmatprep.subr.bf16.mxu0 0
    %588 = vmatpush1.bf16.msra.mxu0 0
    %589 = vmatprep.subr.bf16.mxu0 0
    %590 = vmatpush1.bf16.msra.mxu0 0
    %591 = vmatprep.mubr.bf16.mxu0 0
    %592 = vmatmul.mubr.bf16.gmra.mrb[0].mxu0 %v557
    %v593 = vpop.f32.mrb[0].mxu0
    %v594 = vadd.f32 0.0, %v593
    %v595 = vpop.f32.mrb[0].mxu0
    %v596 = vpop.f32.mrb[0].mxu0
    %v597 = vpop.f32.mrb[0].mxu0
    %598 = vdwg.mxu0
    %v600 = vrot.slane %v594, 3
    %v602 = vadd.f32 %v138, %v600
    %v603 = vmul.f32 %v602, 0.5
    %v604 = vtanh.pop %v603
    %v605 = vmul.f32 %v604, 0.5
    %v606 = vadd.f32 %v605, 0.5
    %v607 = vtanh.pop %v602
    %v609 = vrot.slane %v538, 7
    %v611 = vmul.f32 %v606, %v609
    %613 = vrot.lane.b32.xlu0 %v607, 64
    %v614 = vpop.permute.xlu0 %613
    %v616 = vmul.f32 %v606, %v614
    %618 = vrot.lane.b32.xlu0 %v616, 32
    %v619 = vpop.permute.xlu0 %618
    %v621 = vadd.f32 %v611, %v619
    %v622 = vtanh.pop %v621
    %624 = vrot.lane.b32.xlu0 %v622, 64
    %v625 = vpop.permute.xlu0 %624
    %v627 = vmul.f32 %v606, %v625
    %vm628 = vcmp.eq.s32.totalorder %v144, 5
    %v629 = vlaneseq
    %v630 = vshrl.u32 %v629, 7
    %v631 = vsub.s32 5, %v630
    %v632 = vrot.slane %v627, %v631
    %v633 = vsel %vm628, %v632, %v550
    %v634 = vpack.c.bf16 %v627, %v627
    %v636 = vshrl.u32 %v634, 16
    %v638 = vrot.slane %v636, 2
    %639 = vrot.lane.b32.xlu0 %v638, 32
    %v640 = vpop.permute.xlu0 %639
    %v642 = vsel %vm99, %v640, 0
    %644 = vmatprep.subr.bf16.mxu0 0
    %645 = vmatpush1.bf16.msra.mxu0 %v90
    %646 = vmatprep.subr.bf16.mxu0 0
    %647 = vmatpush1.bf16.msra.mxu0 %v91
    %648 = vmatprep.subr.bf16.mxu0 0
    %649 = vmatpush1.bf16.msra.mxu0 0
    %650 = vmatprep.subr.bf16.mxu0 0
    %651 = vmatpush1.bf16.msra.mxu0 0
    %652 = vmatprep.subr.bf16.mxu0 0
    %653 = vmatpush1.bf16.msra.mxu0 0
    %654 = vmatprep.subr.bf16.mxu0 0
    %655 = vmatpush1.bf16.msra.mxu0 0
    %656 = vmatprep.subr.bf16.mxu0 0
    %657 = vmatpush1.bf16.msra.mxu0 0
    %658 = vmatprep.subr.bf16.mxu0 0
    %659 = vmatpush1.bf16.msra.mxu0 0
    %660 = vmatprep.subr.bf16.mxu0 0
    %661 = vmatpush1.bf16.msra.mxu0 0
    %662 = vmatprep.subr.bf16.mxu0 0
    %663 = vmatpush1.bf16.msra.mxu0 0
    %664 = vmatprep.subr.bf16.mxu0 0
    %665 = vmatpush1.bf16.msra.mxu0 0
    %666 = vmatprep.subr.bf16.mxu0 0
    %667 = vmatpush1.bf16.msra.mxu0 0
    %668 = vmatprep.subr.bf16.mxu0 0
    %669 = vmatpush1.bf16.msra.mxu0 0
    %670 = vmatprep.subr.bf16.mxu0 0
    %671 = vmatpush1.bf16.msra.mxu0 0
    %672 = vmatprep.subr.bf16.mxu0 0
    %673 = vmatpush1.bf16.msra.mxu0 0
    %674 = vmatprep.subr.bf16.mxu0 0
    %675 = vmatpush1.bf16.msra.mxu0 0
    %676 = vmatprep.mubr.bf16.mxu0 0
    %677 = vmatmul.mubr.bf16.gmra.mrb[0].mxu0 %v642
    %v678 = vpop.f32.mrb[0].mxu0
    %v679 = vadd.f32 0.0, %v678
    %v680 = vpop.f32.mrb[0].mxu0
    %v681 = vpop.f32.mrb[0].mxu0
    %v682 = vpop.f32.mrb[0].mxu0
    %683 = vdwg.mxu0
    %v685 = vrot.slane %v679, 2
    %v687 = vadd.f32 %v138, %v685
    %v688 = vmul.f32 %v687, 0.5
    %v689 = vtanh.pop %v688
    %v690 = vmul.f32 %v689, 0.5
    %v691 = vadd.f32 %v690, 0.5
    %v692 = vtanh.pop %v687
    %v694 = vrot.slane %v621, 7
    %v696 = vmul.f32 %v691, %v694
    %698 = vrot.lane.b32.xlu0 %v692, 64
    %v699 = vpop.permute.xlu0 %698
    %v701 = vmul.f32 %v691, %v699
    %703 = vrot.lane.b32.xlu0 %v701, 32
    %v704 = vpop.permute.xlu0 %703
    %v706 = vadd.f32 %v696, %v704
    %v707 = vtanh.pop %v706
    %709 = vrot.lane.b32.xlu0 %v707, 64
    %v710 = vpop.permute.xlu0 %709
    %v712 = vmul.f32 %v691, %v710
    %vm713 = vcmp.eq.s32.totalorder %v144, 6
    %v714 = vlaneseq
    %v715 = vshrl.u32 %v714, 7
    %v716 = vsub.s32 6, %v715
    %v717 = vrot.slane %v712, %v716
    %v718 = vsel %vm713, %v717, %v633
    %v719 = vpack.c.bf16 %v712, %v712
    %v721 = vrot.slane %v719, 3
    %722 = vrot.lane.b32.xlu0 %v721, 32
    %v723 = vpop.permute.xlu0 %722
    %v725 = vsel %vm99, %v723, 0
    %727 = vmatprep.subr.bf16.mxu0 0
    %728 = vmatpush1.bf16.msra.mxu0 %v90
    %729 = vmatprep.subr.bf16.mxu0 0
    %730 = vmatpush1.bf16.msra.mxu0 %v91
    %731 = vmatprep.subr.bf16.mxu0 0
    %732 = vmatpush1.bf16.msra.mxu0 0
    %733 = vmatprep.subr.bf16.mxu0 0
    %734 = vmatpush1.bf16.msra.mxu0 0
    %735 = vmatprep.subr.bf16.mxu0 0
    %736 = vmatpush1.bf16.msra.mxu0 0
    %737 = vmatprep.subr.bf16.mxu0 0
    %738 = vmatpush1.bf16.msra.mxu0 0
    %739 = vmatprep.subr.bf16.mxu0 0
    %740 = vmatpush1.bf16.msra.mxu0 0
    %741 = vmatprep.subr.bf16.mxu0 0
    %742 = vmatpush1.bf16.msra.mxu0 0
    %743 = vmatprep.subr.bf16.mxu0 0
    %744 = vmatpush1.bf16.msra.mxu0 0
    %745 = vmatprep.subr.bf16.mxu0 0
    %746 = vmatpush1.bf16.msra.mxu0 0
    %747 = vmatprep.subr.bf16.mxu0 0
    %748 = vmatpush1.bf16.msra.mxu0 0
    %749 = vmatprep.subr.bf16.mxu0 0
    %750 = vmatpush1.bf16.msra.mxu0 0
    %751 = vmatprep.subr.bf16.mxu0 0
    %752 = vmatpush1.bf16.msra.mxu0 0
    %753 = vmatprep.subr.bf16.mxu0 0
    %754 = vmatpush1.bf16.msra.mxu0 0
    %755 = vmatprep.subr.bf16.mxu0 0
    %756 = vmatpush1.bf16.msra.mxu0 0
    %757 = vmatprep.subr.bf16.mxu0 0
    %758 = vmatpush1.bf16.msra.mxu0 0
    %759 = vmatprep.mubr.bf16.mxu0 0
    %760 = vmatmul.mubr.bf16.gmra.mrb[0].mxu0 %v725
    %v761 = vpop.f32.mrb[0].mxu0
    %v762 = vadd.f32 0.0, %v761
    %v763 = vpop.f32.mrb[0].mxu0
    %v764 = vpop.f32.mrb[0].mxu0
    %v765 = vpop.f32.mrb[0].mxu0
    %766 = vdwg.mxu0
    %v768 = vrot.slane %v762, 1
    %v770 = vadd.f32 %v138, %v768
    %v771 = vmul.f32 %v770, 0.5
    %v772 = vtanh.pop %v771
    %v773 = vmul.f32 %v772, 0.5
    %v774 = vadd.f32 %v773, 0.5
    %v775 = vtanh.pop %v770
    %v777 = vrot.slane %v706, 7
    %v779 = vmul.f32 %v774, %v777
    %781 = vrot.lane.b32.xlu0 %v775, 64
    %v782 = vpop.permute.xlu0 %781
    %v784 = vmul.f32 %v774, %v782
    %786 = vrot.lane.b32.xlu0 %v784, 32
    %v787 = vpop.permute.xlu0 %786
    %v789 = vadd.f32 %v779, %v787
    %v790 = vtanh.pop %v789
    %792 = vrot.lane.b32.xlu0 %v790, 64
    %v793 = vpop.permute.xlu0 %792
    %v795 = vmul.f32 %v774, %v793
    %vm796 = vcmp.eq.s32.totalorder %v144, 7
    %v797 = vlaneseq
    %v798 = vshrl.u32 %v797, 7
    %v799 = vsub.s32 7, %v798
    %v800 = vrot.slane %v795, %v799
    %v801 = vsel %vm796, %v800, %v718
    %v802 = vpack.c.bf16 %v801, %v801
    %804 = vrot.lane.b32.xlu0 %v802, 32
    %v805 = vpop.permute.xlu0 %804
    %v807 = vsel %vm99, %v805, 0
    %809 = vmatprep.subr.bf16.mxu0 0
    %810 = vmatpush1.bf16.xpose.msra.mxu0 %v807
    %811 = vmatprep.subr.bf16.mxu0 0
    %812 = vmatpush1.bf16.xpose.msra.mxu0 0
    %813 = vmatprep.subr.bf16.mxu0 0
    %814 = vmatpush1.bf16.xpose.msra.mxu0 0
    %815 = vmatprep.subr.bf16.mxu0 0
    %816 = vmatpush1.bf16.xpose.msra.mxu0 0
    %817 = vmatprep.subr.bf16.mxu0 0
    %818 = vmatpush1.bf16.xpose.msra.mxu0 0
    %819 = vmatprep.subr.bf16.mxu0 0
    %820 = vmatpush1.bf16.xpose.msra.mxu0 0
    %821 = vmatprep.subr.bf16.mxu0 0
    %822 = vmatpush1.bf16.xpose.msra.mxu0 0
    %823 = vmatprep.subr.bf16.mxu0 0
    %824 = vmatpush1.bf16.xpose.msra.mxu0 0
    %825 = vmatprep.subr.bf16.mxu0 0
    %826 = vmatpush1.bf16.xpose.msra.mxu0 0
    %827 = vmatprep.subr.bf16.mxu0 0
    %828 = vmatpush1.bf16.xpose.msra.mxu0 0
    %829 = vmatprep.subr.bf16.mxu0 0
    %830 = vmatpush1.bf16.xpose.msra.mxu0 0
    %831 = vmatprep.subr.bf16.mxu0 0
    %832 = vmatpush1.bf16.xpose.msra.mxu0 0
    %833 = vmatprep.subr.bf16.mxu0 0
    %834 = vmatpush1.bf16.xpose.msra.mxu0 0
    %835 = vmatprep.subr.bf16.mxu0 0
    %836 = vmatpush1.bf16.xpose.msra.mxu0 0
    %837 = vmatprep.subr.bf16.mxu0 0
    %838 = vmatpush1.bf16.xpose.msra.mxu0 0
    %839 = vmatprep.subr.bf16.mxu0 0
    %840 = vmatpush1.bf16.xpose.msra.mxu0 0
    %841 = vmatprep.mubr.bf16.mxu0 0
    %842 = vmatmul.mubr.bf16.gmra.mrb[0].mxu0 %v807
    %v843 = vpop.f32.mrb[0].mxu0
    %v844 = vadd.f32 0.0, %v843
    %v845 = vpop.f32.mrb[0].mxu0
    %v846 = vpop.f32.mrb[0].mxu0
    %v847 = vpop.f32.mrb[0].mxu0
    %848 = vdwg.mxu0
    %v849 = vlaneseq
    %v850 = vand.u32 %v849, 127
    %vm851 = vcmp.le.s32.totalorder %v850, %v144
    %v852 = vsel %vm851, %v844, -1e+11
    %vm853 = vcmask 64512
    %v854 = vsel %vm853, %v852, -inf
    %855 = vmax.xlane.f32.xlu0 %v854
    %v856 = vpop.xlane.xlu0 %855
    %v857 = vsub.f32 %v852, %v856
    %v858 = vmul.f32 %v857, 1.442695
    %v859 = vpow.pop %v858
    %v860 = vsel %vm853, %v859, 0.0
    %861 = vadd.xlane.f32.xlu0 %v860
    %v862 = vpop.xlane.xlu0 %861
    %v863 = vrcp.pop %v862
    %v864 = vmul.f32 %v859, %v863
    %v865 = vpack.c.bf16 %v864, %v864
    %v867 = vsel %vm853, %v865, 0
    %vm869 = vcmask 1043456
    %v870 = vsel %vm869, %v805, 0
    %872 = vmatprep.subr.bf16.mxu0 0
    %873 = vmatpush1.bf16.msra.mxu0 %v870
    %874 = vmatprep.subr.bf16.mxu0 0
    %875 = vmatpush1.bf16.msra.mxu0 0
    %876 = vmatprep.subr.bf16.mxu0 0
    %877 = vmatpush1.bf16.msra.mxu0 0
    %878 = vmatprep.subr.bf16.mxu0 0
    %879 = vmatpush1.bf16.msra.mxu0 0
    %880 = vmatprep.subr.bf16.mxu0 0
    %881 = vmatpush1.bf16.msra.mxu0 0
    %882 = vmatprep.subr.bf16.mxu0 0
    %883 = vmatpush1.bf16.msra.mxu0 0
    %884 = vmatprep.subr.bf16.mxu0 0
    %885 = vmatpush1.bf16.msra.mxu0 0
    %886 = vmatprep.subr.bf16.mxu0 0
    %887 = vmatpush1.bf16.msra.mxu0 0
    %888 = vmatprep.subr.bf16.mxu0 0
    %889 = vmatpush1.bf16.msra.mxu0 0
    %890 = vmatprep.subr.bf16.mxu0 0
    %891 = vmatpush1.bf16.msra.mxu0 0
    %892 = vmatprep.subr.bf16.mxu0 0
    %893 = vmatpush1.bf16.msra.mxu0 0
    %894 = vmatprep.subr.bf16.mxu0 0
    %895 = vmatpush1.bf16.msra.mxu0 0
    %896 = vmatprep.subr.bf16.mxu0 0
    %897 = vmatpush1.bf16.msra.mxu0 0
    %898 = vmatprep.subr.bf16.mxu0 0
    %899 = vmatpush1.bf16.msra.mxu0 0
    %900 = vmatprep.subr.bf16.mxu0 0
    %901 = vmatpush1.bf16.msra.mxu0 0
    %902 = vmatprep.subr.bf16.mxu0 0
    %903 = vmatpush1.bf16.msra.mxu0 0
    %904 = vmatprep.mubr.bf16.mxu0 0
    %905 = vmatmul.mubr.bf16.gmra.mrb[0].mxu0 %v867
    %v906 = vpop.f32.mrb[0].mxu0
    %v907 = vadd.f32 0.0, %v906
    %v908 = vpop.f32.mrb[0].mxu0
    %v909 = vpop.f32.mrb[0].mxu0
    %v910 = vpop.f32.mrb[0].mxu0
    %911 = vdwg.mxu0
    %v912 = vld [vmem:[#allocation8] sm:$0xff]
    %v913 = vld [vmem:[#allocation8 + $0x8] sm:$0xff]
    %v914 = vld [vmem:[#allocation8 + $0x10] sm:$0xff]
    %v915 = vld [vmem:[#allocation8 + $0x18] sm:$0xff]
    %v916 = vpack.c.bf16 %v913, %v912
    %v917 = vpack.c.bf16 %v915, %v914
    %v918 = vld [vmem:[#allocation8 + $0x20] sm:$0xff]
    %v919 = vld [vmem:[#allocation8 + $0x28] sm:$0xff]
    %v920 = vld [vmem:[#allocation8 + $0x30] sm:$0xff]
    %v921 = vld [vmem:[#allocation8 + $0x38] sm:$0xff]
    %v922 = vpack.c.bf16 %v919, %v918
    %v923 = vpack.c.bf16 %v921, %v920
    %v924 = vpack.c.bf16 %v907, %v907
    %v926 = vsel %vm99, %v924, 0
    %928 = vmatprep.subr.bf16.mxu0 0
    %929 = vmatpush1.bf16.msra.mxu0 %v922
    %930 = vmatprep.subr.bf16.mxu0 0
    %931 = vmatpush1.bf16.msra.mxu0 %v923
    %932 = vmatprep.subr.bf16.mxu0 0
    %933 = vmatpush1.bf16.msra.mxu0 0
    %934 = vmatprep.subr.bf16.mxu0 0
    %935 = vmatpush1.bf16.msra.mxu0 0
    %936 = vmatprep.subr.bf16.mxu0 0
    %937 = vmatpush1.bf16.msra.mxu0 0
    %938 = vmatprep.subr.bf16.mxu0 0
    %939 = vmatpush1.bf16.msra.mxu0 0
    %940 = vmatprep.subr.bf16.mxu0 0
    %941 = vmatpush1.bf16.msra.mxu0 0
    %942 = vmatprep.subr.bf16.mxu0 0
    %943 = vmatpush1.bf16.msra.mxu0 0
    %944 = vmatprep.subr.bf16.mxu0 0
    %945 = vmatpush1.bf16.msra.mxu0 0
    %946 = vmatprep.subr.bf16.mxu0 0
    %947 = vmatpush1.bf16.msra.mxu0 0
    %948 = vmatprep.subr.bf16.mxu0 0
    %949 = vmatpush1.bf16.msra.mxu0 0
    %950 = vmatprep.subr.bf16.mxu0 0
    %951 = vmatpush1.bf16.msra.mxu0 0
    %952 = vmatprep.subr.bf16.mxu0 0
    %953 = vmatpush1.bf16.msra.mxu0 0
    %954 = vmatprep.subr.bf16.mxu0 0
    %955 = vmatpush1.bf16.msra.mxu0 0
    %956 = vmatprep.subr.bf16.mxu0 0
    %957 = vmatpush1.bf16.msra.mxu0 0
    %958 = vmatprep.subr.bf16.mxu0 0
    %959 = vmatpush1.bf16.msra.mxu0 0
    %960 = vmatprep.mubr.bf16.mxu0 0
    %961 = vmatmul.mubr.bf16.gmra.mrb[0].mxu0 %v926
    %v962 = vpop.f32.mrb[0].mxu0
    %v963 = vadd.f32 0.0, %v962
    %v964 = vpop.f32.mrb[0].mxu0
    %v965 = vpop.f32.mrb[0].mxu0
    %v966 = vpop.f32.mrb[0].mxu0
    %967 = vdwg.mxu0
    %968 = vmatprep.subr.bf16.mxu0 0
    %969 = vmatpush1.bf16.msra.mxu0 %v916
    %970 = vmatprep.subr.bf16.mxu0 0
    %971 = vmatpush1.bf16.msra.mxu0 %v917
    %972 = vmatprep.subr.bf16.mxu0 0
    %973 = vmatpush1.bf16.msra.mxu0 0
    %974 = vmatprep.subr.bf16.mxu0 0
    %975 = vmatpush1.bf16.msra.mxu0 0
    %976 = vmatprep.subr.bf16.mxu0 0
    %977 = vmatpush1.bf16.msra.mxu0 0
    %978 = vmatprep.subr.bf16.mxu0 0
    %979 = vmatpush1.bf16.msra.mxu0 0
    %980 = vmatprep.subr.bf16.mxu0 0
    %981 = vmatpush1.bf16.msra.mxu0 0
    %982 = vmatprep.subr.bf16.mxu0 0
    %983 = vmatpush1.bf16.msra.mxu0 0
    %984 = vmatprep.subr.bf16.mxu0 0
    %985 = vmatpush1.bf16.msra.mxu0 0
    %986 = vmatprep.subr.bf16.mxu0 0
    %987 = vmatpush1.bf16.msra.mxu0 0
    %988 = vmatprep.subr.bf16.mxu0 0
    %989 = vmatpush1.bf16.msra.mxu0 0
    %990 = vmatprep.subr.bf16.mxu0 0
    %991 = vmatpush1.bf16.msra.mxu0 0
    %992 = vmatprep.subr.bf16.mxu0 0
    %993 = vmatpush1.bf16.msra.mxu0 0
    %994 = vmatprep.subr.bf16.mxu0 0
    %995 = vmatpush1.bf16.msra.mxu0 0
    %996 = vmatprep.subr.bf16.mxu0 0
    %997 = vmatpush1.bf16.msra.mxu0 0
    %998 = vmatprep.subr.bf16.mxu0 0
    %999 = vmatpush1.bf16.msra.mxu0 0
    %1000 = vmatprep.mubr.bf16.mxu0 0
    %1001 = vmatmul.mubr.bf16.gmra.mrb[0].mxu0 %v807
    %v1002 = vpop.f32.mrb[0].mxu0
    %v1003 = vadd.f32 %v963, %v1002
    %v1004 = vpop.f32.mrb[0].mxu0
    %v1005 = vpop.f32.mrb[0].mxu0
    %v1006 = vpop.f32.mrb[0].mxu0
    %1007 = vdwg.mxu0
    %v1008 = vld [vmem:[%s5] sm:$0x1]
    %v1010 = vlaneseq
    %v1011 = vshrl.u32 %v1010, 7
    %v1012 = vsub.s32 0, %v1011
    %v1013 = vrot.slane %v1008, %v1012
    %v1015 = vadd.f32 %v1003, %v1013
    %1016 = vmax.xlane.f32.xlu0 %v1015
    %v1017 = vpop.xlane.xlu0 %1016
    %v1018 = vsub.f32 %v1015, %v1017
    %v1019 = vmul.f32 %v1018, 1.442695
    %v1020 = vpow.pop %v1019
    %1021 = vadd.xlane.f32.xlu0 %v1020
    %v1022 = vpop.xlane.xlu0 %1021
    %v1023 = vlog2.pop %v1022
    %v1024 = vmul.f32 %v1023, 0.6931472
    %v1025 = vsub.f32 %v1018, %v1024
    %1026 = vst [vmem:[#allocation10] sm:$0xff] %v1025
    // Predicated region
    $region42: #{tpu_custom_call.1} parent=1 // pred_check
      _
    $region43: #{tpu_custom_call.1} parent=1 // pred_check_branch
      %1028 = sbr.rel (0) target = $region45
    $region44: #{tpu_custom_call.1} parent=1 // pred_region
      %s1030 = ssub.s32 128, 128
      %1031 = vsyncadd [#allocation4], %s1030
      %s1033 = sshll.u32 [#allocation10], 4
      %s1034 = int_to_ptr.vmem [resolvable:$true] %s1033
      %1036 = dma.vmem_to_hbm [thread:$0]  %s1034, 128, %s6, [#allocation4]
    $region45: #{tpu_custom_call.1} parent=1 // pred_fallthru
      _
    // Predicated region
    $region46: #{tpu_custom_call.1} parent=1 // pred_check
      _
    $region47: #{tpu_custom_call.1} parent=1 // pred_check_branch
      %1038 = sbr.rel (0) target = $region49
    $region48: #{tpu_custom_call.1} parent=1 // pred_region
      %1039 = dma.done [#allocation4], 128
    $region49: #{tpu_custom_call.1} parent=1 // pred_fallthru
      _
    %1040 = vsyncpa [#allocation3], 1
    %1041 = vsyncpa [#allocation6], 1
    %1042 = vsyncpa [#allocation9], 1
    %1043 = vsyncpa [#allocation4], 1

</llo_original>
